<compile_context>
chip_gen: v6e
topology: v6e:2x2x1
jax: 0.10.0
libtpu: 0.0.40
codegen_flags: <defaults>
</compile_context>

<pallas_src>
import jax
import jax.numpy as jnp
import numpy as np
from jax.experimental import pallas as pl
from jax.experimental.pallas import tpu as pltpu


T_OUT = 5        # the module only consumes out[:, :5, :]
BN_EPS = 1e-5    # torch BatchNorm1d default


def _make_kernel(num_layers, t_out, batch, hidden, eps):
    """Whole forward (LSTM x layers, BN, FC) in one kernel invocation."""
    H = hidden
    B = batch
    f32 = jnp.float32

    def kernel(*refs):
        x_ref, w0_ref, u0_ref, b0_ref = refs[0:4]
        idx = 4
        deep_refs = []
        for _ in range(num_layers - 1):
            deep_refs.append((refs[idx], refs[idx + 1], refs[idx + 2]))
            idx += 3
        p_ref, gamma_ref, betafc_ref, wfc_ref = refs[idx:idx + 4]
        out_ref = refs[idx + 4]
        hbuf = refs[idx + 5]           # VMEM scratch (t_out*B, H)

        # ---------------- hoisted out of the recurrence ----------------------
        # Layer-0 input projection for all steps as one MXU dot, bias folded in.
        xg0 = jnp.dot(x_ref[...], w0_ref[...],
                      preferred_element_type=f32) + b0_ref[...]      # (TB, 4H)
        u0 = u0_ref[...]                                             # (H, 4H)
        deep_wi = [wi[...] for (wi, _, _) in deep_refs]              # (H, 4H)
        deep_wh = [wh[...] for (_, wh, _) in deep_refs]              # (H, 4H)
        deep_b = [jnp.broadcast_to(b[...], (B, 4 * H))               # hoisted bcast
                  for (_, _, b) in deep_refs]

        def cell(gates, c_prev):
            # Gate columns pre-permuted to [i | f | o | g]:
            #   one tanh-form sigmoid over a contiguous (B,3H) slice and one
            #   tanh over (B,H) -> 2 EUP pushes per cell, no exp/divide.
            sig = 0.5 * (jnp.tanh(0.5 * gates[:, :3 * H]) + 1.0)
            g = jnp.tanh(gates[:, 3 * H:])
            c = sig[:, H:2 * H] * c_prev + sig[:, 0:H] * g
            h = sig[:, 2 * H:3 * H] * jnp.tanh(c)
            return h, c

        # h0 = c0 = 0 (matches the torch forward); carried as plain values.
        hs = [jnp.zeros((B, H), f32) for _ in range(num_layers)]
        cs = [jnp.zeros((B, H), f32) for _ in range(num_layers)]

        # Fully unrolled time loop (t_out == 5): states stay in vregs; only the
        # last layer's h_t is stored into the tiny VMEM staging buffer.
        for t in range(t_out):
            # Layer 0: input projection already done -> one recurrent dot.
            gates = xg0[t * B:(t + 1) * B, :] + jnp.dot(
                hs[0], u0, preferred_element_type=f32)
            hs[0], cs[0] = cell(gates, cs[0])

            # Deeper layers: split dots (no per-step concat).
            for l in range(1, num_layers):
                gates = (jnp.dot(hs[l - 1], deep_wi[l - 1],
                                 preferred_element_type=f32)
                         + jnp.dot(hs[l], deep_wh[l - 1],
                                   preferred_element_type=f32)
                         + deep_b[l - 1])
                hs[l], cs[l] = cell(gates, cs[l])

            hbuf[t * B:(t + 1) * B, :] = hs[num_layers - 1]

        # -------- BatchNorm1d + FC, hoisted & batched over all steps ---------
        # Training-mode batch statistics per time-channel (biased variance),
        # computed for all 5 steps at once with a block-averaging matrix P.
        # TODO(synk): eval-mode BN (running stats) and running-stat updates
        # are not modeled (matches the pure-JAX reference below).
        h2 = hbuf[...]                                               # (TB, H)
        P = p_ref[...]                                               # (TB, TB)
        m_rows = jnp.sum(jnp.dot(P, h2, preferred_element_type=f32),
                         axis=1, keepdims=True)                      # (TB, 1)
        d = h2 - m_rows
        v_rows = jnp.sum(jnp.dot(P, d * d, preferred_element_type=f32),
                         axis=1, keepdims=True)                      # (TB, 1)
        scale = gamma_ref[...] * jax.lax.rsqrt(v_rows + eps)         # (TB, 1)
        # BN affine folded past the FC: beta/b_fc already fused in betafc_ref.
        out_ref[...] = (jnp.dot(d, wfc_ref[...], preferred_element_type=f32)
                        * scale + betafc_ref[...])

    return kernel


def prepare_params(params, batch_size):
    """One-time, outside-jit parameter layout for the kernel.

    Gate blocks are permuted from torch order [i|f|g|o] to [i|f|o|g], weights
    transposed, biases fused, BN affine folded into per-row post-FC scalars,
    and the block-averaging matrix P built for this batch size.
    """
    H = params["w_hh"][0].shape[1]
    L = len(params["w_ih"])
    B = batch_size

    def perm(w):  # permute gate blocks along axis 0: [i,f,g,o] -> [i,f,o,g]
        return jnp.concatenate(
            [w[0:H], w[H:2 * H], w[3 * H:4 * H], w[2 * H:3 * H]], axis=0)

    w0 = jnp.transpose(perm(params["w_ih"][0]))                    # (D, 4H)
    u0 = jnp.transpose(perm(params["w_hh"][0]))                    # (H, 4H)
    b0 = perm(params["b_ih"][0] + params["b_hh"][0])[None, :]      # (1, 4H)

    deep_wi, deep_wh, deep_b = [], [], []
    for l in range(1, L):
        deep_wi.append(jnp.transpose(perm(params["w_ih"][l])))     # (H, 4H)
        deep_wh.append(jnp.transpose(perm(params["w_hh"][l])))     # (H, 4H)
        deep_b.append(perm(params["b_ih"][l] + params["b_hh"][l])[None, :])

    wfc_t = jnp.transpose(params["w_fc"])                          # (H, O)
    gamma = params["bn_gamma"][:T_OUT]                             # (5,)
    beta = params["bn_beta"][:T_OUT]                               # (5,)
    gamma_rows = jnp.repeat(gamma, B)[:, None].astype(jnp.float32)       # (TB,1)
    betafc = beta[:, None] * jnp.sum(wfc_t, axis=0)[None, :] \
        + params["b_fc"][None, :]                                  # (5, O)
    betafc_rows = jnp.repeat(betafc, B, axis=0).astype(jnp.float32)      # (TB,O)

    # Block-diagonal averaging matrix: (P @ v)[row] = mean over that step's
    # B rows, pre-scaled so a following lane-sum gives the (B*H)-mean.
    P = jnp.asarray(np.kron(np.eye(T_OUT), np.ones((B, B))) / (B * H),
                    dtype=jnp.float32)                             # (TB, TB)

    return {
        "w0": w0, "u0": u0, "b0": b0,
        "deep_wi": deep_wi, "deep_wh": deep_wh, "deep_b": deep_b,
        "wfc": wfc_t, "gamma_rows": gamma_rows,
        "betafc_rows": betafc_rows, "P": P,
    }


@jax.jit
def lstm_forward(x, prepped):
    """x: (B, T, input_size) f32, prepped from prepare_params -> (B, 5, O)."""
    B, T, D = x.shape
    H = prepped["u0"].shape[0]
    O = prepped["wfc"].shape[1]
    L = 1 + len(prepped["deep_wi"])
    TB = T_OUT * B
    assert prepped["P"].shape[0] == TB, "prepare_params batch_size mismatch"

    # Only input-dependent layout glue stays in the jitted wrapper (tiny).
    x_flat = jnp.transpose(x[:, :T_OUT, :], (1, 0, 2)).reshape(TB, D)

    inputs = [x_flat, prepped["w0"], prepped["u0"], prepped["b0"]]
    for l in range(L - 1):
        inputs += [prepped["deep_wi"][l], prepped["deep_wh"][l],
                   prepped["deep_b"][l]]
    inputs += [prepped["P"], prepped["gamma_rows"],
               prepped["betafc_rows"], prepped["wfc"]]

    vmem = pl.BlockSpec(memory_space=pltpu.MemorySpace.VMEM)
    out_flat = pl.pallas_call(
        _make_kernel(L, T_OUT, B, H, BN_EPS),
        out_shape=jax.ShapeDtypeStruct((TB, O), jnp.float32),
        in_specs=[vmem] * len(inputs),
        out_specs=vmem,
        scratch_shapes=[pltpu.VMEM((TB, H), jnp.float32)],
    )(*inputs)

    # (5*B, O) -> (B, 5, O): tiny.
    return jnp.transpose(out_flat.reshape(T_OUT, B, O), (1, 0, 2))


def init_params(key, input_size, hidden, layers, output_size, seq_len):
    """nn.LSTM / nn.Linear style init U(-1/sqrt(H), 1/sqrt(H)); random BN affine."""
    ks = list(jax.random.split(key, 4 * layers + 4))
    s = 1.0 / (hidden ** 0.5)
    u = lambda k, shape, a: jax.random.uniform(k, shape, jnp.float32, -a, a)
    w_ih, w_hh, b_ih, b_hh = [], [], [], []
    for l in range(layers):
        in_l = input_size if l == 0 else hidden
        w_ih.append(u(ks[4 * l + 0], (4 * hidden, in_l), s))
        w_hh.append(u(ks[4 * l + 1], (4 * hidden, hidden), s))
        b_ih.append(u(ks[4 * l + 2], (4 * hidden,), s))
        b_hh.append(u(ks[4 * l + 3], (4 * hidden,), s))
    kg, kb, kwf, kbf = ks[-4:]
    return {
        "w_ih": w_ih, "w_hh": w_hh, "b_ih": b_ih, "b_hh": b_hh,
        # Non-default BN affine so the scale/shift path is actually exercised.
        "bn_gamma": jax.random.uniform(kg, (seq_len,), jnp.float32, 0.5, 1.5),
        "bn_beta": jax.random.uniform(kb, (seq_len,), jnp.float32, -0.5, 0.5),
        "w_fc": u(kwf, (output_size, hidden), s),
        "b_fc": u(kbf, (output_size,), s),
    }


def reference_forward(x, params):
    """Pure-JAX mirror of the torch forward: full-T LSTM, BN(30), fc on :5."""
    def lstm_layer(seq, w_ih, w_hh, b_ih, b_hh):
        Hh = w_hh.shape[1]

        def step(carry, x_t):
            h, c = carry
            gates = x_t @ w_ih.T + b_ih + h @ w_hh.T + b_hh
            i, f, g, o = jnp.split(gates, 4, axis=1)
            c = jax.nn.sigmoid(f) * c + jax.nn.sigmoid(i) * jnp.tanh(g)
            h = jax.nn.sigmoid(o) * jnp.tanh(c)
            return (h, c), h

        h0 = jnp.zeros((seq.shape[0], Hh), jnp.float32)
        _, hs = jax.lax.scan(step, (h0, h0), jnp.transpose(seq, (1, 0, 2)))
        return jnp.transpose(hs, (1, 0, 2))

    out = x
    for l in range(len(params["w_ih"])):
        out = lstm_layer(out, params["w_ih"][l], params["w_hh"][l],
                         params["b_ih"][l], params["b_hh"][l])
    # BatchNorm1d(T): channel dim == time dim; training-mode batch statistics.
    mean = jnp.mean(out, axis=(0, 2), keepdims=True)
    var = jnp.mean((out - mean) ** 2, axis=(0, 2), keepdims=True)
    out = (out - mean) * jax.lax.rsqrt(var + BN_EPS)
    out = out * params["bn_gamma"][None, :, None] + params["bn_beta"][None, :, None]
    return out[:, :T_OUT, :] @ params["w_fc"].T + params["b_fc"]


if __name__ == "__main__":
    B = 2
    T = 30            # BatchNorm1d(30) over the time dim fixes seq_len == 30
    input_size = 4
    hidden = 32
    layers = 2
    output_size = 4

    key = jax.random.PRNGKey(0)
    k_x, k_p = jax.random.split(key)
    x = jax.random.normal(k_x, (B, T, input_size), jnp.float32)
    params = init_params(k_p, input_size, hidden, layers, output_size, T)

    prepped = prepare_params(params, B)     # one-time, outside the jitted call
    out = lstm_forward(x, prepped)
    out = jax.block_until_ready(out)

    ref = reference_forward(x, params)
    assert out.shape == (B, T_OUT, output_size), out.shape
    err = float(jnp.max(jnp.abs(out - ref)))
    assert jnp.allclose(out, ref, atol=1e-4, rtol=1e-4), err

    print("KERNEL_OK")
</pallas_src>

<mosaic_0001>
module attributes {stable_mosaic.version = 11 : i64} {
  func.func @kernel(%arg0: memref<10x4xf32, #tpu.memory_space<vmem>>, %arg1: memref<4x128xf32, #tpu.memory_space<vmem>>, %arg2: memref<32x128xf32, #tpu.memory_space<vmem>>, %arg3: memref<1x128xf32, #tpu.memory_space<vmem>>, %arg4: memref<32x128xf32, #tpu.memory_space<vmem>>, %arg5: memref<32x128xf32, #tpu.memory_space<vmem>>, %arg6: memref<1x128xf32, #tpu.memory_space<vmem>>, %arg7: memref<10x10xf32, #tpu.memory_space<vmem>>, %arg8: memref<10x1xf32, #tpu.memory_space<vmem>>, %arg9: memref<10x4xf32, #tpu.memory_space<vmem>>, %arg10: memref<32x4xf32, #tpu.memory_space<vmem>>, %arg11: memref<10x4xf32, #tpu.memory_space<vmem>>, %arg12: memref<10x32xf32, #tpu.memory_space<vmem>>) attributes {dimension_semantics = [], scalar_prefetch = 0 : i64, scratch_operands = 1 : i64, tpu.core_type = #tpu.core_type<tc>} {
    %c0 = arith.constant 0 : index
    %c0_0 = arith.constant 0 : index
    %0 = vector.load %arg0[%c0, %c0_0] : memref<10x4xf32, #tpu.memory_space<vmem>>, vector<10x4xf32>
    %c0_1 = arith.constant 0 : index
    %c0_2 = arith.constant 0 : index
    %1 = vector.load %arg1[%c0_1, %c0_2] : memref<4x128xf32, #tpu.memory_space<vmem>>, vector<4x128xf32>
    %cst = arith.constant dense<0.000000e+00> : vector<10x128xf32>
    %2 = tpu.matmul %0, %1, %cst {dimension_numbers = #tpu.dot_dimension_numbers<[1], [0], [0], [1], [0, 0, 1, 1], [], []>} : vector<10x4xf32>, vector<4x128xf32>, vector<10x128xf32> -> vector<10x128xf32>
    %c0_3 = arith.constant 0 : index
    %c0_4 = arith.constant 0 : index
    %3 = vector.load %arg3[%c0_3, %c0_4] : memref<1x128xf32, #tpu.memory_space<vmem>>, vector<1x128xf32>
    %4 = vector.broadcast %3 : vector<1x128xf32> to vector<10x128xf32>
    %5 = arith.addf %2, %4 : vector<10x128xf32>
    %c0_5 = arith.constant 0 : index
    %c0_6 = arith.constant 0 : index
    %6 = vector.load %arg2[%c0_5, %c0_6] : memref<32x128xf32, #tpu.memory_space<vmem>>, vector<32x128xf32>
    %c0_7 = arith.constant 0 : index
    %c0_8 = arith.constant 0 : index
    %7 = vector.load %arg4[%c0_7, %c0_8] : memref<32x128xf32, #tpu.memory_space<vmem>>, vector<32x128xf32>
    %c0_9 = arith.constant 0 : index
    %c0_10 = arith.constant 0 : index
    %8 = vector.load %arg5[%c0_9, %c0_10] : memref<32x128xf32, #tpu.memory_space<vmem>>, vector<32x128xf32>
    %c0_11 = arith.constant 0 : index
    %c0_12 = arith.constant 0 : index
    %9 = vector.load %arg6[%c0_11, %c0_12] : memref<1x128xf32, #tpu.memory_space<vmem>>, vector<1x128xf32>
    %10 = vector.shape_cast %9 : vector<1x128xf32> to vector<1x128xf32>
    %11 = vector.broadcast %10 : vector<1x128xf32> to vector<2x128xf32>
    %cst_13 = arith.constant 0.000000e+00 : f32
    %12 = vector.broadcast %cst_13 : f32 to vector<2x32xf32>
    %cst_14 = arith.constant 0.000000e+00 : f32
    %13 = vector.broadcast %cst_14 : f32 to vector<2x32xf32>
    %cst_15 = arith.constant 0.000000e+00 : f32
    %14 = vector.broadcast %cst_15 : f32 to vector<2x32xf32>
    %cst_16 = arith.constant 0.000000e+00 : f32
    %15 = vector.broadcast %cst_16 : f32 to vector<2x32xf32>
    %16 = vector.extract_strided_slice %5 {offsets = [0, 0], sizes = [2, 128], strides = [1, 1]} : vector<10x128xf32> to vector<2x128xf32>
    %cst_17 = arith.constant dense<0.000000e+00> : vector<2x128xf32>
    %17 = tpu.matmul %12, %6, %cst_17 {dimension_numbers = #tpu.dot_dimension_numbers<[1], [0], [0], [1], [0, 0, 1, 1], [], []>} : vector<2x32xf32>, vector<32x128xf32>, vector<2x128xf32> -> vector<2x128xf32>
    %18 = arith.addf %16, %17 : vector<2x128xf32>
    %19 = vector.extract_strided_slice %18 {offsets = [0, 0], sizes = [2, 96], strides = [1, 1]} : vector<2x128xf32> to vector<2x96xf32>
    %cst_18 = arith.constant 5.000000e-01 : f32
    %20 = vector.broadcast %cst_18 : f32 to vector<2x96xf32>
    %21 = arith.mulf %20, %19 : vector<2x96xf32>
    %22 = math.tanh %21 : vector<2x96xf32>
    %cst_19 = arith.constant 1.000000e+00 : f32
    %23 = vector.broadcast %cst_19 : f32 to vector<2x96xf32>
    %24 = arith.addf %22, %23 : vector<2x96xf32>
    %cst_20 = arith.constant 5.000000e-01 : f32
    %25 = vector.broadcast %cst_20 : f32 to vector<2x96xf32>
    %26 = arith.mulf %25, %24 : vector<2x96xf32>
    %27 = vector.extract_strided_slice %18 {offsets = [0, 96], sizes = [2, 32], strides = [1, 1]} : vector<2x128xf32> to vector<2x32xf32>
    %28 = math.tanh %27 : vector<2x32xf32>
    %29 = vector.extract_strided_slice %26 {offsets = [0, 32], sizes = [2, 32], strides = [1, 1]} : vector<2x96xf32> to vector<2x32xf32>
    %30 = arith.mulf %29, %14 : vector<2x32xf32>
    %31 = vector.extract_strided_slice %26 {offsets = [0, 0], sizes = [2, 32], strides = [1, 1]} : vector<2x96xf32> to vector<2x32xf32>
    %32 = arith.mulf %31, %28 : vector<2x32xf32>
    %33 = arith.addf %30, %32 : vector<2x32xf32>
    %34 = vector.extract_strided_slice %26 {offsets = [0, 64], sizes = [2, 32], strides = [1, 1]} : vector<2x96xf32> to vector<2x32xf32>
    %35 = math.tanh %33 : vector<2x32xf32>
    %36 = arith.mulf %34, %35 : vector<2x32xf32>
    %cst_21 = arith.constant dense<0.000000e+00> : vector<2x128xf32>
    %37 = tpu.matmul %36, %7, %cst_21 {dimension_numbers = #tpu.dot_dimension_numbers<[1], [0], [0], [1], [0, 0, 1, 1], [], []>} : vector<2x32xf32>, vector<32x128xf32>, vector<2x128xf32> -> vector<2x128xf32>
    %cst_22 = arith.constant dense<0.000000e+00> : vector<2x128xf32>
    %38 = tpu.matmul %13, %8, %cst_22 {dimension_numbers = #tpu.dot_dimension_numbers<[1], [0], [0], [1], [0, 0, 1, 1], [], []>} : vector<2x32xf32>, vector<32x128xf32>, vector<2x128xf32> -> vector<2x128xf32>
    %39 = arith.addf %37, %38 : vector<2x128xf32>
    %40 = arith.addf %39, %11 : vector<2x128xf32>
    %41 = vector.extract_strided_slice %40 {offsets = [0, 0], sizes = [2, 96], strides = [1, 1]} : vector<2x128xf32> to vector<2x96xf32>
    %cst_23 = arith.constant 5.000000e-01 : f32
    %42 = vector.broadcast %cst_23 : f32 to vector<2x96xf32>
    %43 = arith.mulf %42, %41 : vector<2x96xf32>
    %44 = math.tanh %43 : vector<2x96xf32>
    %cst_24 = arith.constant 1.000000e+00 : f32
    %45 = vector.broadcast %cst_24 : f32 to vector<2x96xf32>
    %46 = arith.addf %44, %45 : vector<2x96xf32>
    %cst_25 = arith.constant 5.000000e-01 : f32
    %47 = vector.broadcast %cst_25 : f32 to vector<2x96xf32>
    %48 = arith.mulf %47, %46 : vector<2x96xf32>
    %49 = vector.extract_strided_slice %40 {offsets = [0, 96], sizes = [2, 32], strides = [1, 1]} : vector<2x128xf32> to vector<2x32xf32>
    %50 = math.tanh %49 : vector<2x32xf32>
    %51 = vector.extract_strided_slice %48 {offsets = [0, 32], sizes = [2, 32], strides = [1, 1]} : vector<2x96xf32> to vector<2x32xf32>
    %52 = arith.mulf %51, %15 : vector<2x32xf32>
    %53 = vector.extract_strided_slice %48 {offsets = [0, 0], sizes = [2, 32], strides = [1, 1]} : vector<2x96xf32> to vector<2x32xf32>
    %54 = arith.mulf %53, %50 : vector<2x32xf32>
    %55 = arith.addf %52, %54 : vector<2x32xf32>
    %56 = vector.extract_strided_slice %48 {offsets = [0, 64], sizes = [2, 32], strides = [1, 1]} : vector<2x96xf32> to vector<2x32xf32>
    %57 = math.tanh %55 : vector<2x32xf32>
    %58 = arith.mulf %56, %57 : vector<2x32xf32>
    %c0_26 = arith.constant 0 : index
    %c0_27 = arith.constant 0 : index
    %59 = vector.load %arg12[%c0_26, %c0_27] : memref<10x32xf32, #tpu.memory_space<vmem>>, vector<2x32xf32>
    tpu.vector_store %arg12[%c0_26, %c0_27], %58 {strides = array<i32>} : memref<10x32xf32, #tpu.memory_space<vmem>>, vector<2x32xf32>,
    %60 = vector.extract_strided_slice %5 {offsets = [2, 0], sizes = [2, 128], strides = [1, 1]} : vector<10x128xf32> to vector<2x128xf32>
    %cst_28 = arith.constant dense<0.000000e+00> : vector<2x128xf32>
    %61 = tpu.matmul %36, %6, %cst_28 {dimension_numbers = #tpu.dot_dimension_numbers<[1], [0], [0], [1], [0, 0, 1, 1], [], []>} : vector<2x32xf32>, vector<32x128xf32>, vector<2x128xf32> -> vector<2x128xf32>
    %62 = arith.addf %60, %61 : vector<2x128xf32>
    %63 = vector.extract_strided_slice %62 {offsets = [0, 0], sizes = [2, 96], strides = [1, 1]} : vector<2x128xf32> to vector<2x96xf32>
    %cst_29 = arith.constant 5.000000e-01 : f32
    %64 = vector.broadcast %cst_29 : f32 to vector<2x96xf32>
    %65 = arith.mulf %64, %63 : vector<2x96xf32>
    %66 = math.tanh %65 : vector<2x96xf32>
    %cst_30 = arith.constant 1.000000e+00 : f32
    %67 = vector.broadcast %cst_30 : f32 to vector<2x96xf32>
    %68 = arith.addf %66, %67 : vector<2x96xf32>
    %cst_31 = arith.constant 5.000000e-01 : f32
    %69 = vector.broadcast %cst_31 : f32 to vector<2x96xf32>
    %70 = arith.mulf %69, %68 : vector<2x96xf32>
    %71 = vector.extract_strided_slice %62 {offsets = [0, 96], sizes = [2, 32], strides = [1, 1]} : vector<2x128xf32> to vector<2x32xf32>
    %72 = math.tanh %71 : vector<2x32xf32>
    %73 = vector.extract_strided_slice %70 {offsets = [0, 32], sizes = [2, 32], strides = [1, 1]} : vector<2x96xf32> to vector<2x32xf32>
    %74 = arith.mulf %73, %33 : vector<2x32xf32>
    %75 = vector.extract_strided_slice %70 {offsets = [0, 0], sizes = [2, 32], strides = [1, 1]} : vector<2x96xf32> to vector<2x32xf32>
    %76 = arith.mulf %75, %72 : vector<2x32xf32>
    %77 = arith.addf %74, %76 : vector<2x32xf32>
    %78 = vector.extract_strided_slice %70 {offsets = [0, 64], sizes = [2, 32], strides = [1, 1]} : vector<2x96xf32> to vector<2x32xf32>
    %79 = math.tanh %77 : vector<2x32xf32>
    %80 = arith.mulf %78, %79 : vector<2x32xf32>
    %cst_32 = arith.constant dense<0.000000e+00> : vector<2x128xf32>
    %81 = tpu.matmul %80, %7, %cst_32 {dimension_numbers = #tpu.dot_dimension_numbers<[1], [0], [0], [1], [0, 0, 1, 1], [], []>} : vector<2x32xf32>, vector<32x128xf32>, vector<2x128xf32> -> vector<2x128xf32>
    %cst_33 = arith.constant dense<0.000000e+00> : vector<2x128xf32>
    %82 = tpu.matmul %58, %8, %cst_33 {dimension_numbers = #tpu.dot_dimension_numbers<[1], [0], [0], [1], [0, 0, 1, 1], [], []>} : vector<2x32xf32>, vector<32x128xf32>, vector<2x128xf32> -> vector<2x128xf32>
    %83 = arith.addf %81, %82 : vector<2x128xf32>
    %84 = arith.addf %83, %11 : vector<2x128xf32>
    %85 = vector.extract_strided_slice %84 {offsets = [0, 0], sizes = [2, 96], strides = [1, 1]} : vector<2x128xf32> to vector<2x96xf32>
    %cst_34 = arith.constant 5.000000e-01 : f32
    %86 = vector.broadcast %cst_34 : f32 to vector<2x96xf32>
    %87 = arith.mulf %86, %85 : vector<2x96xf32>
    %88 = math.tanh %87 : vector<2x96xf32>
    %cst_35 = arith.constant 1.000000e+00 : f32
    %89 = vector.broadcast %cst_35 : f32 to vector<2x96xf32>
    %90 = arith.addf %88, %89 : vector<2x96xf32>
    %cst_36 = arith.constant 5.000000e-01 : f32
    %91 = vector.broadcast %cst_36 : f32 to vector<2x96xf32>
    %92 = arith.mulf %91, %90 : vector<2x96xf32>
    %93 = vector.extract_strided_slice %84 {offsets = [0, 96], sizes = [2, 32], strides = [1, 1]} : vector<2x128xf32> to vector<2x32xf32>
    %94 = math.tanh %93 : vector<2x32xf32>
    %95 = vector.extract_strided_slice %92 {offsets = [0, 32], sizes = [2, 32], strides = [1, 1]} : vector<2x96xf32> to vector<2x32xf32>
    %96 = arith.mulf %95, %55 : vector<2x32xf32>
    %97 = vector.extract_strided_slice %92 {offsets = [0, 0], sizes = [2, 32], strides = [1, 1]} : vector<2x96xf32> to vector<2x32xf32>
    %98 = arith.mulf %97, %94 : vector<2x32xf32>
    %99 = arith.addf %96, %98 : vector<2x32xf32>
    %100 = vector.extract_strided_slice %92 {offsets = [0, 64], sizes = [2, 32], strides = [1, 1]} : vector<2x96xf32> to vector<2x32xf32>
    %101 = math.tanh %99 : vector<2x32xf32>
    %102 = arith.mulf %100, %101 : vector<2x32xf32>
    %c2 = arith.constant 2 : index
    %c0_37 = arith.constant 0 : index
    %103 = vector.load %arg12[%c2, %c0_37] : memref<10x32xf32, #tpu.memory_space<vmem>>, vector<2x32xf32>
    tpu.vector_store %arg12[%c2, %c0_37], %102 {strides = array<i32>} : memref<10x32xf32, #tpu.memory_space<vmem>>, vector<2x32xf32>,
    %104 = vector.extract_strided_slice %5 {offsets = [4, 0], sizes = [2, 128], strides = [1, 1]} : vector<10x128xf32> to vector<2x128xf32>
    %cst_38 = arith.constant dense<0.000000e+00> : vector<2x128xf32>
    %105 = tpu.matmul %80, %6, %cst_38 {dimension_numbers = #tpu.dot_dimension_numbers<[1], [0], [0], [1], [0, 0, 1, 1], [], []>} : vector<2x32xf32>, vector<32x128xf32>, vector<2x128xf32> -> vector<2x128xf32>
    %106 = arith.addf %104, %105 : vector<2x128xf32>
    %107 = vector.extract_strided_slice %106 {offsets = [0, 0], sizes = [2, 96], strides = [1, 1]} : vector<2x128xf32> to vector<2x96xf32>
    %cst_39 = arith.constant 5.000000e-01 : f32
    %108 = vector.broadcast %cst_39 : f32 to vector<2x96xf32>
    %109 = arith.mulf %108, %107 : vector<2x96xf32>
    %110 = math.tanh %109 : vector<2x96xf32>
    %cst_40 = arith.constant 1.000000e+00 : f32
    %111 = vector.broadcast %cst_40 : f32 to vector<2x96xf32>
    %112 = arith.addf %110, %111 : vector<2x96xf32>
    %cst_41 = arith.constant 5.000000e-01 : f32
    %113 = vector.broadcast %cst_41 : f32 to vector<2x96xf32>
    %114 = arith.mulf %113, %112 : vector<2x96xf32>
    %115 = vector.extract_strided_slice %106 {offsets = [0, 96], sizes = [2, 32], strides = [1, 1]} : vector<2x128xf32> to vector<2x32xf32>
    %116 = math.tanh %115 : vector<2x32xf32>
    %117 = vector.extract_strided_slice %114 {offsets = [0, 32], sizes = [2, 32], strides = [1, 1]} : vector<2x96xf32> to vector<2x32xf32>
    %118 = arith.mulf %117, %77 : vector<2x32xf32>
    %119 = vector.extract_strided_slice %114 {offsets = [0, 0], sizes = [2, 32], strides = [1, 1]} : vector<2x96xf32> to vector<2x32xf32>
    %120 = arith.mulf %119, %116 : vector<2x32xf32>
    %121 = arith.addf %118, %120 : vector<2x32xf32>
    %122 = vector.extract_strided_slice %114 {offsets = [0, 64], sizes = [2, 32], strides = [1, 1]} : vector<2x96xf32> to vector<2x32xf32>
    %123 = math.tanh %121 : vector<2x32xf32>
    %124 = arith.mulf %122, %123 : vector<2x32xf32>
    %cst_42 = arith.constant dense<0.000000e+00> : vector<2x128xf32>
    %125 = tpu.matmul %124, %7, %cst_42 {dimension_numbers = #tpu.dot_dimension_numbers<[1], [0], [0], [1], [0, 0, 1, 1], [], []>} : vector<2x32xf32>, vector<32x128xf32>, vector<2x128xf32> -> vector<2x128xf32>
    %cst_43 = arith.constant dense<0.000000e+00> : vector<2x128xf32>
    %126 = tpu.matmul %102, %8, %cst_43 {dimension_numbers = #tpu.dot_dimension_numbers<[1], [0], [0], [1], [0, 0, 1, 1], [], []>} : vector<2x32xf32>, vector<32x128xf32>, vector<2x128xf32> -> vector<2x128xf32>
    %127 = arith.addf %125, %126 : vector<2x128xf32>
    %128 = arith.addf %127, %11 : vector<2x128xf32>
    %129 = vector.extract_strided_slice %128 {offsets = [0, 0], sizes = [2, 96], strides = [1, 1]} : vector<2x128xf32> to vector<2x96xf32>
    %cst_44 = arith.constant 5.000000e-01 : f32
    %130 = vector.broadcast %cst_44 : f32 to vector<2x96xf32>
    %131 = arith.mulf %130, %129 : vector<2x96xf32>
    %132 = math.tanh %131 : vector<2x96xf32>
    %cst_45 = arith.constant 1.000000e+00 : f32
    %133 = vector.broadcast %cst_45 : f32 to vector<2x96xf32>
    %134 = arith.addf %132, %133 : vector<2x96xf32>
    %cst_46 = arith.constant 5.000000e-01 : f32
    %135 = vector.broadcast %cst_46 : f32 to vector<2x96xf32>
    %136 = arith.mulf %135, %134 : vector<2x96xf32>
    %137 = vector.extract_strided_slice %128 {offsets = [0, 96], sizes = [2, 32], strides = [1, 1]} : vector<2x128xf32> to vector<2x32xf32>
    %138 = math.tanh %137 : vector<2x32xf32>
    %139 = vector.extract_strided_slice %136 {offsets = [0, 32], sizes = [2, 32], strides = [1, 1]} : vector<2x96xf32> to vector<2x32xf32>
    %140 = arith.mulf %139, %99 : vector<2x32xf32>
    %141 = vector.extract_strided_slice %136 {offsets = [0, 0], sizes = [2, 32], strides = [1, 1]} : vector<2x96xf32> to vector<2x32xf32>
    %142 = arith.mulf %141, %138 : vector<2x32xf32>
    %143 = arith.addf %140, %142 : vector<2x32xf32>
    %144 = vector.extract_strided_slice %136 {offsets = [0, 64], sizes = [2, 32], strides = [1, 1]} : vector<2x96xf32> to vector<2x32xf32>
    %145 = math.tanh %143 : vector<2x32xf32>
    %146 = arith.mulf %144, %145 : vector<2x32xf32>
    %c4 = arith.constant 4 : index
    %c0_47 = arith.constant 0 : index
    %147 = vector.load %arg12[%c4, %c0_47] : memref<10x32xf32, #tpu.memory_space<vmem>>, vector<2x32xf32>
    tpu.vector_store %arg12[%c4, %c0_47], %146 {strides = array<i32>} : memref<10x32xf32, #tpu.memory_space<vmem>>, vector<2x32xf32>,
    %148 = vector.extract_strided_slice %5 {offsets = [6, 0], sizes = [2, 128], strides = [1, 1]} : vector<10x128xf32> to vector<2x128xf32>
    %cst_48 = arith.constant dense<0.000000e+00> : vector<2x128xf32>
    %149 = tpu.matmul %124, %6, %cst_48 {dimension_numbers = #tpu.dot_dimension_numbers<[1], [0], [0], [1], [0, 0, 1, 1], [], []>} : vector<2x32xf32>, vector<32x128xf32>, vector<2x128xf32> -> vector<2x128xf32>
    %150 = arith.addf %148, %149 : vector<2x128xf32>
    %151 = vector.extract_strided_slice %150 {offsets = [0, 0], sizes = [2, 96], strides = [1, 1]} : vector<2x128xf32> to vector<2x96xf32>
    %cst_49 = arith.constant 5.000000e-01 : f32
    %152 = vector.broadcast %cst_49 : f32 to vector<2x96xf32>
    %153 = arith.mulf %152, %151 : vector<2x96xf32>
    %154 = math.tanh %153 : vector<2x96xf32>
    %cst_50 = arith.constant 1.000000e+00 : f32
    %155 = vector.broadcast %cst_50 : f32 to vector<2x96xf32>
    %156 = arith.addf %154, %155 : vector<2x96xf32>
    %cst_51 = arith.constant 5.000000e-01 : f32
    %157 = vector.broadcast %cst_51 : f32 to vector<2x96xf32>
    %158 = arith.mulf %157, %156 : vector<2x96xf32>
    %159 = vector.extract_strided_slice %150 {offsets = [0, 96], sizes = [2, 32], strides = [1, 1]} : vector<2x128xf32> to vector<2x32xf32>
    %160 = math.tanh %159 : vector<2x32xf32>
    %161 = vector.extract_strided_slice %158 {offsets = [0, 32], sizes = [2, 32], strides = [1, 1]} : vector<2x96xf32> to vector<2x32xf32>
    %162 = arith.mulf %161, %121 : vector<2x32xf32>
    %163 = vector.extract_strided_slice %158 {offsets = [0, 0], sizes = [2, 32], strides = [1, 1]} : vector<2x96xf32> to vector<2x32xf32>
    %164 = arith.mulf %163, %160 : vector<2x32xf32>
    %165 = arith.addf %162, %164 : vector<2x32xf32>
    %166 = vector.extract_strided_slice %158 {offsets = [0, 64], sizes = [2, 32], strides = [1, 1]} : vector<2x96xf32> to vector<2x32xf32>
    %167 = math.tanh %165 : vector<2x32xf32>
    %168 = arith.mulf %166, %167 : vector<2x32xf32>
    %cst_52 = arith.constant dense<0.000000e+00> : vector<2x128xf32>
    %169 = tpu.matmul %168, %7, %cst_52 {dimension_numbers = #tpu.dot_dimension_numbers<[1], [0], [0], [1], [0, 0, 1, 1], [], []>} : vector<2x32xf32>, vector<32x128xf32>, vector<2x128xf32> -> vector<2x128xf32>
    %cst_53 = arith.constant dense<0.000000e+00> : vector<2x128xf32>
    %170 = tpu.matmul %146, %8, %cst_53 {dimension_numbers = #tpu.dot_dimension_numbers<[1], [0], [0], [1], [0, 0, 1, 1], [], []>} : vector<2x32xf32>, vector<32x128xf32>, vector<2x128xf32> -> vector<2x128xf32>
    %171 = arith.addf %169, %170 : vector<2x128xf32>
    %172 = arith.addf %171, %11 : vector<2x128xf32>
    %173 = vector.extract_strided_slice %172 {offsets = [0, 0], sizes = [2, 96], strides = [1, 1]} : vector<2x128xf32> to vector<2x96xf32>
    %cst_54 = arith.constant 5.000000e-01 : f32
    %174 = vector.broadcast %cst_54 : f32 to vector<2x96xf32>
    %175 = arith.mulf %174, %173 : vector<2x96xf32>
    %176 = math.tanh %175 : vector<2x96xf32>
    %cst_55 = arith.constant 1.000000e+00 : f32
    %177 = vector.broadcast %cst_55 : f32 to vector<2x96xf32>
    %178 = arith.addf %176, %177 : vector<2x96xf32>
    %cst_56 = arith.constant 5.000000e-01 : f32
    %179 = vector.broadcast %cst_56 : f32 to vector<2x96xf32>
    %180 = arith.mulf %179, %178 : vector<2x96xf32>
    %181 = vector.extract_strided_slice %172 {offsets = [0, 96], sizes = [2, 32], strides = [1, 1]} : vector<2x128xf32> to vector<2x32xf32>
    %182 = math.tanh %181 : vector<2x32xf32>
    %183 = vector.extract_strided_slice %180 {offsets = [0, 32], sizes = [2, 32], strides = [1, 1]} : vector<2x96xf32> to vector<2x32xf32>
    %184 = arith.mulf %183, %143 : vector<2x32xf32>
    %185 = vector.extract_strided_slice %180 {offsets = [0, 0], sizes = [2, 32], strides = [1, 1]} : vector<2x96xf32> to vector<2x32xf32>
    %186 = arith.mulf %185, %182 : vector<2x32xf32>
    %187 = arith.addf %184, %186 : vector<2x32xf32>
    %188 = vector.extract_strided_slice %180 {offsets = [0, 64], sizes = [2, 32], strides = [1, 1]} : vector<2x96xf32> to vector<2x32xf32>
    %189 = math.tanh %187 : vector<2x32xf32>
    %190 = arith.mulf %188, %189 : vector<2x32xf32>
    %c6 = arith.constant 6 : index
    %c0_57 = arith.constant 0 : index
    %191 = vector.load %arg12[%c6, %c0_57] : memref<10x32xf32, #tpu.memory_space<vmem>>, vector<2x32xf32>
    tpu.vector_store %arg12[%c6, %c0_57], %190 {strides = array<i32>} : memref<10x32xf32, #tpu.memory_space<vmem>>, vector<2x32xf32>,
    %192 = vector.extract_strided_slice %5 {offsets = [8, 0], sizes = [2, 128], strides = [1, 1]} : vector<10x128xf32> to vector<2x128xf32>
    %cst_58 = arith.constant dense<0.000000e+00> : vector<2x128xf32>
    %193 = tpu.matmul %168, %6, %cst_58 {dimension_numbers = #tpu.dot_dimension_numbers<[1], [0], [0], [1], [0, 0, 1, 1], [], []>} : vector<2x32xf32>, vector<32x128xf32>, vector<2x128xf32> -> vector<2x128xf32>
    %194 = arith.addf %192, %193 : vector<2x128xf32>
    %195 = vector.extract_strided_slice %194 {offsets = [0, 0], sizes = [2, 96], strides = [1, 1]} : vector<2x128xf32> to vector<2x96xf32>
    %cst_59 = arith.constant 5.000000e-01 : f32
    %196 = vector.broadcast %cst_59 : f32 to vector<2x96xf32>
    %197 = arith.mulf %196, %195 : vector<2x96xf32>
    %198 = math.tanh %197 : vector<2x96xf32>
    %cst_60 = arith.constant 1.000000e+00 : f32
    %199 = vector.broadcast %cst_60 : f32 to vector<2x96xf32>
    %200 = arith.addf %198, %199 : vector<2x96xf32>
    %cst_61 = arith.constant 5.000000e-01 : f32
    %201 = vector.broadcast %cst_61 : f32 to vector<2x96xf32>
    %202 = arith.mulf %201, %200 : vector<2x96xf32>
    %203 = vector.extract_strided_slice %194 {offsets = [0, 96], sizes = [2, 32], strides = [1, 1]} : vector<2x128xf32> to vector<2x32xf32>
    %204 = math.tanh %203 : vector<2x32xf32>
    %205 = vector.extract_strided_slice %202 {offsets = [0, 32], sizes = [2, 32], strides = [1, 1]} : vector<2x96xf32> to vector<2x32xf32>
    %206 = arith.mulf %205, %165 : vector<2x32xf32>
    %207 = vector.extract_strided_slice %202 {offsets = [0, 0], sizes = [2, 32], strides = [1, 1]} : vector<2x96xf32> to vector<2x32xf32>
    %208 = arith.mulf %207, %204 : vector<2x32xf32>
    %209 = arith.addf %206, %208 : vector<2x32xf32>
    %210 = vector.extract_strided_slice %202 {offsets = [0, 64], sizes = [2, 32], strides = [1, 1]} : vector<2x96xf32> to vector<2x32xf32>
    %211 = math.tanh %209 : vector<2x32xf32>
    %212 = arith.mulf %210, %211 : vector<2x32xf32>
    %cst_62 = arith.constant dense<0.000000e+00> : vector<2x128xf32>
    %213 = tpu.matmul %212, %7, %cst_62 {dimension_numbers = #tpu.dot_dimension_numbers<[1], [0], [0], [1], [0, 0, 1, 1], [], []>} : vector<2x32xf32>, vector<32x128xf32>, vector<2x128xf32> -> vector<2x128xf32>
    %cst_63 = arith.constant dense<0.000000e+00> : vector<2x128xf32>
    %214 = tpu.matmul %190, %8, %cst_63 {dimension_numbers = #tpu.dot_dimension_numbers<[1], [0], [0], [1], [0, 0, 1, 1], [], []>} : vector<2x32xf32>, vector<32x128xf32>, vector<2x128xf32> -> vector<2x128xf32>
    %215 = arith.addf %213, %214 : vector<2x128xf32>
    %216 = arith.addf %215, %11 : vector<2x128xf32>
    %217 = vector.extract_strided_slice %216 {offsets = [0, 0], sizes = [2, 96], strides = [1, 1]} : vector<2x128xf32> to vector<2x96xf32>
    %cst_64 = arith.constant 5.000000e-01 : f32
    %218 = vector.broadcast %cst_64 : f32 to vector<2x96xf32>
    %219 = arith.mulf %218, %217 : vector<2x96xf32>
    %220 = math.tanh %219 : vector<2x96xf32>
    %cst_65 = arith.constant 1.000000e+00 : f32
    %221 = vector.broadcast %cst_65 : f32 to vector<2x96xf32>
    %222 = arith.addf %220, %221 : vector<2x96xf32>
    %cst_66 = arith.constant 5.000000e-01 : f32
    %223 = vector.broadcast %cst_66 : f32 to vector<2x96xf32>
    %224 = arith.mulf %223, %222 : vector<2x96xf32>
    %225 = vector.extract_strided_slice %216 {offsets = [0, 96], sizes = [2, 32], strides = [1, 1]} : vector<2x128xf32> to vector<2x32xf32>
    %226 = math.tanh %225 : vector<2x32xf32>
    %227 = vector.extract_strided_slice %224 {offsets = [0, 32], sizes = [2, 32], strides = [1, 1]} : vector<2x96xf32> to vector<2x32xf32>
    %228 = arith.mulf %227, %187 : vector<2x32xf32>
    %229 = vector.extract_strided_slice %224 {offsets = [0, 0], sizes = [2, 32], strides = [1, 1]} : vector<2x96xf32> to vector<2x32xf32>
    %230 = arith.mulf %229, %226 : vector<2x32xf32>
    %231 = arith.addf %228, %230 : vector<2x32xf32>
    %232 = vector.extract_strided_slice %224 {offsets = [0, 64], sizes = [2, 32], strides = [1, 1]} : vector<2x96xf32> to vector<2x32xf32>
    %233 = math.tanh %231 : vector<2x32xf32>
    %234 = arith.mulf %232, %233 : vector<2x32xf32>
    %c8 = arith.constant 8 : index
    %c0_67 = arith.constant 0 : index
    %235 = vector.load %arg12[%c8, %c0_67] : memref<10x32xf32, #tpu.memory_space<vmem>>, vector<2x32xf32>
    tpu.vector_store %arg12[%c8, %c0_67], %234 {strides = array<i32>} : memref<10x32xf32, #tpu.memory_space<vmem>>, vector<2x32xf32>,
    %c0_68 = arith.constant 0 : index
    %c0_69 = arith.constant 0 : index
    %236 = vector.load %arg12[%c0_68, %c0_69] : memref<10x32xf32, #tpu.memory_space<vmem>>, vector<10x32xf32>
    %c0_70 = arith.constant 0 : index
    %c0_71 = arith.constant 0 : index
    %237 = vector.load %arg7[%c0_70, %c0_71] : memref<10x10xf32, #tpu.memory_space<vmem>>, vector<10x10xf32>
    %cst_72 = arith.constant dense<0.000000e+00> : vector<10x32xf32>
    %238 = tpu.matmul %237, %236, %cst_72 {dimension_numbers = #tpu.dot_dimension_numbers<[1], [0], [0], [1], [0, 0, 1, 1], [], []>} : vector<10x10xf32>, vector<10x32xf32>, vector<10x32xf32> -> vector<10x32xf32>
    %cst_73 = arith.constant dense<0.000000e+00> : vector<10xf32>
    %239 = vector.multi_reduction <add>, %238, %cst_73 [1] : vector<10x32xf32> to vector<10xf32>
    %240 = vector.shape_cast %239 : vector<10xf32> to vector<10x1xf32>
    %241 = vector.broadcast %240 : vector<10x1xf32> to vector<10x32xf32>
    %242 = arith.subf %236, %241 : vector<10x32xf32>
    %243 = arith.mulf %242, %242 : vector<10x32xf32>
    %cst_74 = arith.constant dense<0.000000e+00> : vector<10x32xf32>
    %244 = tpu.matmul %237, %243, %cst_74 {dimension_numbers = #tpu.dot_dimension_numbers<[1], [0], [0], [1], [0, 0, 1, 1], [], []>} : vector<10x10xf32>, vector<10x32xf32>, vector<10x32xf32> -> vector<10x32xf32>
    %cst_75 = arith.constant dense<0.000000e+00> : vector<10xf32>
    %245 = vector.multi_reduction <add>, %244, %cst_75 [1] : vector<10x32xf32> to vector<10xf32>
    %246 = vector.shape_cast %245 : vector<10xf32> to vector<10x1xf32>
    %c0_76 = arith.constant 0 : index
    %c0_77 = arith.constant 0 : index
    %247 = vector.load %arg8[%c0_76, %c0_77] : memref<10x1xf32, #tpu.memory_space<vmem>>, vector<10x1xf32>
    %cst_78 = arith.constant 9.99999974E-6 : f32
    %248 = vector.broadcast %cst_78 : f32 to vector<10x1xf32>
    %249 = arith.addf %246, %248 : vector<10x1xf32>
    %250 = math.rsqrt %249 : vector<10x1xf32>
    %251 = arith.mulf %247, %250 : vector<10x1xf32>
    %c0_79 = arith.constant 0 : index
    %c0_80 = arith.constant 0 : index
    %252 = vector.load %arg10[%c0_79, %c0_80] : memref<32x4xf32, #tpu.memory_space<vmem>>, vector<32x4xf32>
    %cst_81 = arith.constant dense<0.000000e+00> : vector<10x4xf32>
    %253 = tpu.matmul %242, %252, %cst_81 {dimension_numbers = #tpu.dot_dimension_numbers<[1], [0], [0], [1], [0, 0, 1, 1], [], []>} : vector<10x32xf32>, vector<32x4xf32>, vector<10x4xf32> -> vector<10x4xf32>
    %254 = vector.broadcast %251 : vector<10x1xf32> to vector<10x4xf32>
    %255 = arith.mulf %253, %254 : vector<10x4xf32>
    %c0_82 = arith.constant 0 : index
    %c0_83 = arith.constant 0 : index
    %256 = vector.load %arg9[%c0_82, %c0_83] : memref<10x4xf32, #tpu.memory_space<vmem>>, vector<10x4xf32>
    %257 = arith.addf %255, %256 : vector<10x4xf32>
    %c0_84 = arith.constant 0 : index
    %c0_85 = arith.constant 0 : index
    %258 = vector.load %arg11[%c0_84, %c0_85] : memref<10x4xf32, #tpu.memory_space<vmem>>, vector<10x4xf32>
    tpu.vector_store %arg11[%c0_84, %c0_85], %257 {strides = array<i32>} : memref<10x4xf32, #tpu.memory_space<vmem>>, vector<10x4xf32>,
    return
  }
}

</mosaic_0001>

<llo_original>
// kernel: lstm_forward.1
$region0: #{lstm_forward.1}
  #allocation0 [shape = 'u32[]', space=smem, size = 0x4, offset = 0x4, fixed_abs, tag = 'smem constant byte address 0x4 - core index']
  #allocation1 [shape = 'u32[144,128]{1,0:T(1,128)}', space=vmem, size = 0x12000, scoped, tag = 'internal scratch']
  #allocation2 [shape = 'f32[10,32]{1,0:T(8,128)}', space=vmem, size = 0x2000, scoped, tag = 'scratch operand']
  %s0 = inlined_call_operand.vmem [shape: f32[10,4], index: 0, kind: input, shape index: {}]
  %s1 = inlined_call_operand.vmem [shape: f32[4,128], index: 1, kind: input, shape index: {}]
  %s2 = inlined_call_operand.vmem [shape: f32[32,128], index: 2, kind: input, shape index: {}]
  %s3 = inlined_call_operand.vmem [shape: f32[1,128], index: 3, kind: input, shape index: {}]
  %s4 = inlined_call_operand.vmem [shape: f32[32,128], index: 4, kind: input, shape index: {}]
  %s5 = inlined_call_operand.vmem [shape: f32[32,128], index: 5, kind: input, shape index: {}]
  %s6 = inlined_call_operand.vmem [shape: f32[1,128], index: 6, kind: input, shape index: {}]
  %s7 = inlined_call_operand.vmem [shape: f32[10,10], index: 7, kind: input, shape index: {}]
  %s8 = inlined_call_operand.vmem [shape: f32[10,1], index: 8, kind: input, shape index: {}]
  %s9 = inlined_call_operand.vmem [shape: f32[10,4], index: 9, kind: input, shape index: {}]
  %s10 = inlined_call_operand.vmem [shape: f32[32,4], index: 10, kind: input, shape index: {}]
  %s11 = inlined_call_operand.vmem [shape: f32[10,4], index: 11, kind: output, shape index: {}]
  %s12 = sld [smem:[#allocation0]]
  $region54: #{lstm_forward.1} parent=0
    _
  %s14 = ssub.s32 1, %s12
  %s15 = scalar_select 0, %s14, %s12
  // Predicated region
  $region2: #{lstm_forward.1} parent=0 // pred_check
    _
  $region3: #{lstm_forward.1} parent=0 // pred_check_branch
    %17 = sbr.rel (0) target = $region5
  $region4: #{lstm_forward.1} parent=0 // pred_region
    _
  $region5: #{lstm_forward.1} parent=0 // pred_fallthru
    _
  // Predicated region
  $region6: #{lstm_forward.1} parent=0 // pred_check
    _
  $region7: #{lstm_forward.1} parent=0 // pred_check_branch
    %19 = sbr.rel (0) target = $region9
  $region8: #{lstm_forward.1} parent=0 // pred_region
    _
  $region9: #{lstm_forward.1} parent=0 // pred_fallthru
    _
  // Predicated region
  $region10: #{lstm_forward.1} parent=0 // pred_check
    _
  $region11: #{lstm_forward.1} parent=0 // pred_check_branch
    %21 = sbr.rel (0) target = $region13
  $region12: #{lstm_forward.1} parent=0 // pred_region
    _
  $region13: #{lstm_forward.1} parent=0 // pred_fallthru
    _
  // Predicated region
  $region14: #{lstm_forward.1} parent=0 // pred_check
    _
  $region15: #{lstm_forward.1} parent=0 // pred_check_branch
    %23 = sbr.rel (0) target = $region17
  $region16: #{lstm_forward.1} parent=0 // pred_region
    _
  $region17: #{lstm_forward.1} parent=0 // pred_fallthru
    _
  // Predicated region
  $region18: #{lstm_forward.1} parent=0 // pred_check
    _
  $region19: #{lstm_forward.1} parent=0 // pred_check_branch
    %25 = sbr.rel (0) target = $region21
  $region20: #{lstm_forward.1} parent=0 // pred_region
    _
  $region21: #{lstm_forward.1} parent=0 // pred_fallthru
    _
  // Predicated region
  $region22: #{lstm_forward.1} parent=0 // pred_check
    _
  $region23: #{lstm_forward.1} parent=0 // pred_check_branch
    %27 = sbr.rel (0) target = $region25
  $region24: #{lstm_forward.1} parent=0 // pred_region
    _
  $region25: #{lstm_forward.1} parent=0 // pred_fallthru
    _
  // Predicated region
  $region26: #{lstm_forward.1} parent=0 // pred_check
    _
  $region27: #{lstm_forward.1} parent=0 // pred_check_branch
    %29 = sbr.rel (0) target = $region29
  $region28: #{lstm_forward.1} parent=0 // pred_region
    _
  $region29: #{lstm_forward.1} parent=0 // pred_fallthru
    _
  // Predicated region
  $region30: #{lstm_forward.1} parent=0 // pred_check
    _
  $region31: #{lstm_forward.1} parent=0 // pred_check_branch
    %31 = sbr.rel (0) target = $region33
  $region32: #{lstm_forward.1} parent=0 // pred_region
    _
  $region33: #{lstm_forward.1} parent=0 // pred_fallthru
    _
  // Predicated region
  $region34: #{lstm_forward.1} parent=0 // pred_check
    _
  $region35: #{lstm_forward.1} parent=0 // pred_check_branch
    %33 = sbr.rel (0) target = $region37
  $region36: #{lstm_forward.1} parent=0 // pred_region
    _
  $region37: #{lstm_forward.1} parent=0 // pred_fallthru
    _
  // Predicated region
  $region38: #{lstm_forward.1} parent=0 // pred_check
    _
  $region39: #{lstm_forward.1} parent=0 // pred_check_branch
    %35 = sbr.rel (0) target = $region41
  $region40: #{lstm_forward.1} parent=0 // pred_region
    _
  $region41: #{lstm_forward.1} parent=0 // pred_fallthru
    _
  // Predicated region
  $region42: #{lstm_forward.1} parent=0 // pred_check
    _
  $region43: #{lstm_forward.1} parent=0 // pred_check_branch
    %37 = sbr.rel (0) target = $region45
  $region44: #{lstm_forward.1} parent=0 // pred_region
    _
  $region45: #{lstm_forward.1} parent=0 // pred_fallthru
    _
  %v38 = vld [vmem:[%s0] sm:$0xff]
  %v39 = vld [vmem:[%s0 + $0x8] sm:$0x3]
  %v40 = vld [vmem:[%s1] sm:$0xf]
  %v41 = vld [vmem:[%s3] sm:$0x1]
  %v43 = vlaneseq
  %v44 = vshrl.u32 %v43, 7
  %v45 = vsub.s32 0, %v44
  %v46 = vrot.slane %v41, %v45
  %vm48 = vcmask 31744
  %v50 = vsel %vm48, %v38, 0
  %v53 = vsel %vm48, %v39, 0
  %vm55 = vcmask 1043456
  %v57 = vsel %vm55, %v40, 0
  %59 = vmatprep.subr.mxu0 0.0
  %60 = vmatpush1.msra.mxu0 0.0
  %61 = vmatprep.subr.mxu0 0.0
  %62 = vmatpush1.msra.mxu0 0.0
  %63 = vmatprep.subr.mxu0 0.0
  %64 = vmatpush1.msra.mxu0 0.0
  %65 = vmatprep.subr.mxu0 0.0
  %66 = vmatpush1.msra.mxu0 0.0
  %67 = vmatprep.subr.mxu0 0.0
  %68 = vmatpush1.msra.mxu0 0.0
  %69 = vmatprep.subr.mxu0 0.0
  %70 = vmatpush1.msra.mxu0 0.0
  %71 = vmatprep.subr.mxu0 0.0
  %72 = vmatpush1.msra.mxu0 0.0
  %73 = vmatprep.subr.mxu0 0.0
  %74 = vmatpush1.msra.mxu0 0.0
  %75 = vmatprep.subr.mxu0 0.0
  %76 = vmatpush1.msra.mxu0 0.0
  %77 = vmatprep.subr.mxu0 0.0
  %78 = vmatpush1.msra.mxu0 0.0
  %79 = vmatprep.subr.mxu0 0.0
  %80 = vmatpush1.msra.mxu0 0.0
  %81 = vmatprep.subr.mxu0 0.0
  %82 = vmatpush1.msra.mxu0 0.0
  %83 = vmatprep.subr.mxu0 0.0
  %84 = vmatpush1.msra.mxu0 0.0
  %85 = vmatprep.subr.mxu0 0.0
  %86 = vmatpush1.msra.mxu0 0.0
  %87 = vmatprep.subr.mxu0 0.0
  %88 = vmatpush1.msra.mxu0 0.0
  %89 = vmatprep.subr.mxu0 0.0
  %90 = vmatpush1.msra.mxu0 %v57
  %91 = vmatprep.subr.mxu0 0.0
  %92 = vmatpush2.msra.mxu0 0.0
  %93 = vmatprep.subr.mxu0 0.0
  %94 = vmatpush2.msra.mxu0 0.0
  %95 = vmatprep.subr.mxu0 0.0
  %96 = vmatpush2.msra.mxu0 0.0
  %97 = vmatprep.subr.mxu0 0.0
  %98 = vmatpush2.msra.mxu0 0.0
  %99 = vmatprep.subr.mxu0 0.0
  %100 = vmatpush2.msra.mxu0 0.0
  %101 = vmatprep.subr.mxu0 0.0
  %102 = vmatpush2.msra.mxu0 0.0
  %103 = vmatprep.subr.mxu0 0.0
  %104 = vmatpush2.msra.mxu0 0.0
  %105 = vmatprep.subr.mxu0 0.0
  %106 = vmatpush2.msra.mxu0 0.0
  %107 = vmatprep.subr.mxu0 0.0
  %108 = vmatpush2.msra.mxu0 0.0
  %109 = vmatprep.subr.mxu0 0.0
  %110 = vmatpush2.msra.mxu0 0.0
  %111 = vmatprep.subr.mxu0 0.0
  %112 = vmatpush2.msra.mxu0 0.0
  %113 = vmatprep.subr.mxu0 0.0
  %114 = vmatpush2.msra.mxu0 0.0
  %115 = vmatprep.subr.mxu0 0.0
  %116 = vmatpush2.msra.mxu0 0.0
  %117 = vmatprep.subr.mxu0 0.0
  %118 = vmatpush2.msra.mxu0 0.0
  %119 = vmatprep.subr.mxu0 0.0
  %120 = vmatpush2.msra.mxu0 0.0
  %121 = vmatprep.subr.mxu0 0.0
  %122 = vmatpush2.msra.mxu0 0.0
  %123 = vmatprep.mubr.f32.mxu0 0.0
  %124 = vmatmul.mubr.f32.gmra.mxu0 %v50
  %v125 = vpop.f32.mrf.mxu0
  %v126 = vadd.f32 %v46, %v125
  %v127 = vpop.f32.mrf.mxu0
  %128 = vmatprep.mubr.f32.mxu0 0.0
  %129 = vmatmul.mubr.f32.gmra.mxu0 %v53
  %v130 = vpop.f32.mrf.mxu0
  %v131 = vadd.f32 %v46, %v130
  %v132 = vpop.f32.mrf.mxu0
  %133 = vdwg.mxu0
  %v134 = vld [vmem:[%s2] sm:$0xff]
  %v135 = vld [vmem:[%s2 + $0x8] sm:$0xff]
  %v136 = vld [vmem:[%s2 + $0x10] sm:$0xff]
  %v137 = vld [vmem:[%s2 + $0x18] sm:$0xff]
  %v138 = vld [vmem:[%s4] sm:$0xff]
  %v139 = vld [vmem:[%s4 + $0x8] sm:$0xff]
  %v140 = vld [vmem:[%s4 + $0x10] sm:$0xff]
  %v141 = vld [vmem:[%s4 + $0x18] sm:$0xff]
  %v142 = vld [vmem:[%s5] sm:$0xff]
  %v143 = vld [vmem:[%s5 + $0x8] sm:$0xff]
  %v144 = vld [vmem:[%s5 + $0x10] sm:$0xff]
  %v145 = vld [vmem:[%s5 + $0x18] sm:$0xff]
  %v146 = vld [vmem:[%s6] sm:$0x1]
  %v148 = vlaneseq
  %v149 = vshrl.u32 %v148, 7
  %v150 = vsub.s32 0, %v149
  %v151 = vrot.slane %v146, %v150
  %vm153 = vcmask 261120
  %v155 = vsel %vm153, 0.0, 0
  %157 = vmatprep.subr.mxu0 0.0
  %158 = vmatpush1.msra.mxu0 0.0
  %159 = vmatprep.subr.mxu0 0.0
  %160 = vmatpush1.msra.mxu0 0.0
  %161 = vmatprep.subr.mxu0 0.0
  %162 = vmatpush1.msra.mxu0 0.0
  %163 = vmatprep.subr.mxu0 0.0
  %164 = vmatpush1.msra.mxu0 0.0
  %165 = vmatprep.subr.mxu0 0.0
  %166 = vmatpush1.msra.mxu0 0.0
  %167 = vmatprep.subr.mxu0 0.0
  %168 = vmatpush1.msra.mxu0 0.0
  %169 = vmatprep.subr.mxu0 0.0
  %170 = vmatpush1.msra.mxu0 0.0
  %171 = vmatprep.subr.mxu0 0.0
  %172 = vmatpush1.msra.mxu0 0.0
  %173 = vmatprep.subr.mxu0 0.0
  %174 = vmatpush1.msra.mxu0 0.0
  %175 = vmatprep.subr.mxu0 0.0
  %176 = vmatpush1.msra.mxu0 0.0
  %177 = vmatprep.subr.mxu0 0.0
  %178 = vmatpush1.msra.mxu0 0.0
  %179 = vmatprep.subr.mxu0 0.0
  %180 = vmatpush1.msra.mxu0 0.0
  %181 = vmatprep.subr.mxu0 0.0
  %182 = vmatpush1.msra.mxu0 %v137
  %183 = vmatprep.subr.mxu0 0.0
  %184 = vmatpush1.msra.mxu0 %v136
  %185 = vmatprep.subr.mxu0 0.0
  %186 = vmatpush1.msra.mxu0 %v135
  %187 = vmatprep.subr.mxu0 0.0
  %188 = vmatpush1.msra.mxu0 %v134
  %189 = vmatprep.subr.mxu0 0.0
  %190 = vmatpush2.msra.mxu0 0.0
  %191 = vmatprep.subr.mxu0 0.0
  %192 = vmatpush2.msra.mxu0 0.0
  %193 = vmatprep.subr.mxu0 0.0
  %194 = vmatpush2.msra.mxu0 0.0
  %195 = vmatprep.subr.mxu0 0.0
  %196 = vmatpush2.msra.mxu0 0.0
  %197 = vmatprep.subr.mxu0 0.0
  %198 = vmatpush2.msra.mxu0 0.0
  %199 = vmatprep.subr.mxu0 0.0
  %200 = vmatpush2.msra.mxu0 0.0
  %201 = vmatprep.subr.mxu0 0.0
  %202 = vmatpush2.msra.mxu0 0.0
  %203 = vmatprep.subr.mxu0 0.0
  %204 = vmatpush2.msra.mxu0 0.0
  %205 = vmatprep.subr.mxu0 0.0
  %206 = vmatpush2.msra.mxu0 0.0
  %207 = vmatprep.subr.mxu0 0.0
  %208 = vmatpush2.msra.mxu0 0.0
  %209 = vmatprep.subr.mxu0 0.0
  %210 = vmatpush2.msra.mxu0 0.0
  %211 = vmatprep.subr.mxu0 0.0
  %212 = vmatpush2.msra.mxu0 0.0
  %213 = vmatprep.subr.mxu0 0.0
  %214 = vmatpush2.msra.mxu0 0.0
  %215 = vmatprep.subr.mxu0 0.0
  %216 = vmatpush2.msra.mxu0 0.0
  %217 = vmatprep.subr.mxu0 0.0
  %218 = vmatpush2.msra.mxu0 0.0
  %219 = vmatprep.subr.mxu0 0.0
  %220 = vmatpush2.msra.mxu0 0.0
  %221 = vmatprep.mubr.f32.mxu0 0.0
  %222 = vmatmul.mubr.f32.gmra.mxu0 %v155
  %v223 = vpop.f32.mrf.mxu0
  %v224 = vadd.f32 0.0, %v223
  %v225 = vpop.f32.mrf.mxu0
  %226 = vdwg.mxu0
  %v227 = vadd.f32 %v126, %v224
  %v228 = vmul.f32 %v227, 0.5
  %v229 = vtanh.pop %v228
  %v230 = vadd.f32 %v229, 1.0
  %v231 = vmul.f32 %v230, 0.5
  %v232 = vtanh.pop %v227
  %v233 = vmul.f32 %v231, 0.0
  %235 = vrot.lane.b32.xlu0 %v232, 32
  %v236 = vpop.permute.xlu0 %235
  %v238 = vmul.f32 %v231, %v236
  %240 = vrot.lane.b32.xlu0 %v238, 32
  %v241 = vpop.permute.xlu0 %240
  %v243 = vadd.f32 %v233, %v241
  %v244 = vtanh.pop %v243
  %246 = vrot.lane.b32.xlu0 %v244, 32
  %v247 = vpop.permute.xlu0 %246
  %v249 = vmul.f32 %v231, %v247
  %250 = vmatprep.subr.mxu0 0.0
  %251 = vmatpush1.msra.mxu0 0.0
  %252 = vmatprep.subr.mxu0 0.0
  %253 = vmatpush1.msra.mxu0 0.0
  %254 = vmatprep.subr.mxu0 0.0
  %255 = vmatpush1.msra.mxu0 0.0
  %256 = vmatprep.subr.mxu0 0.0
  %257 = vmatpush1.msra.mxu0 0.0
  %258 = vmatprep.subr.mxu0 0.0
  %259 = vmatpush1.msra.mxu0 0.0
  %260 = vmatprep.subr.mxu0 0.0
  %261 = vmatpush1.msra.mxu0 0.0
  %262 = vmatprep.subr.mxu0 0.0
  %263 = vmatpush1.msra.mxu0 0.0
  %264 = vmatprep.subr.mxu0 0.0
  %265 = vmatpush1.msra.mxu0 0.0
  %266 = vmatprep.subr.mxu0 0.0
  %267 = vmatpush1.msra.mxu0 0.0
  %268 = vmatprep.subr.mxu0 0.0
  %269 = vmatpush1.msra.mxu0 0.0
  %270 = vmatprep.subr.mxu0 0.0
  %271 = vmatpush1.msra.mxu0 0.0
  %272 = vmatprep.subr.mxu0 0.0
  %273 = vmatpush1.msra.mxu0 0.0
  %274 = vmatprep.subr.mxu0 0.0
  %275 = vmatpush1.msra.mxu0 %v145
  %276 = vmatprep.subr.mxu0 0.0
  %277 = vmatpush1.msra.mxu0 %v144
  %278 = vmatprep.subr.mxu0 0.0
  %279 = vmatpush1.msra.mxu0 %v143
  %280 = vmatprep.subr.mxu0 0.0
  %281 = vmatpush1.msra.mxu0 %v142
  %282 = vmatprep.subr.mxu0 0.0
  %283 = vmatpush2.msra.mxu0 0.0
  %284 = vmatprep.subr.mxu0 0.0
  %285 = vmatpush2.msra.mxu0 0.0
  %286 = vmatprep.subr.mxu0 0.0
  %287 = vmatpush2.msra.mxu0 0.0
  %288 = vmatprep.subr.mxu0 0.0
  %289 = vmatpush2.msra.mxu0 0.0
  %290 = vmatprep.subr.mxu0 0.0
  %291 = vmatpush2.msra.mxu0 0.0
  %292 = vmatprep.subr.mxu0 0.0
  %293 = vmatpush2.msra.mxu0 0.0
  %294 = vmatprep.subr.mxu0 0.0
  %295 = vmatpush2.msra.mxu0 0.0
  %296 = vmatprep.subr.mxu0 0.0
  %297 = vmatpush2.msra.mxu0 0.0
  %298 = vmatprep.subr.mxu0 0.0
  %299 = vmatpush2.msra.mxu0 0.0
  %300 = vmatprep.subr.mxu0 0.0
  %301 = vmatpush2.msra.mxu0 0.0
  %302 = vmatprep.subr.mxu0 0.0
  %303 = vmatpush2.msra.mxu0 0.0
  %304 = vmatprep.subr.mxu0 0.0
  %305 = vmatpush2.msra.mxu0 0.0
  %306 = vmatprep.subr.mxu0 0.0
  %307 = vmatpush2.msra.mxu0 0.0
  %308 = vmatprep.subr.mxu0 0.0
  %309 = vmatpush2.msra.mxu0 0.0
  %310 = vmatprep.subr.mxu0 0.0
  %311 = vmatpush2.msra.mxu0 0.0
  %312 = vmatprep.subr.mxu0 0.0
  %313 = vmatpush2.msra.mxu0 0.0
  %314 = vmatprep.mubr.f32.mxu0 0.0
  %315 = vmatmul.mubr.f32.gmra.mxu0 %v155
  %v316 = vpop.f32.mrf.mxu0
  %v317 = vadd.f32 0.0, %v316
  %v318 = vpop.f32.mrf.mxu0
  %319 = vdwg.mxu0
  %321 = vrot.lane.b32.xlu0 %v249, 64
  %v322 = vpop.permute.xlu0 %321
  %v323 = vsel %vm153, %v322, 0
  %325 = vmatprep.subr.mxu0 0.0
  %326 = vmatpush1.msra.mxu0 0.0
  %327 = vmatprep.subr.mxu0 0.0
  %328 = vmatpush1.msra.mxu0 0.0
  %329 = vmatprep.subr.mxu0 0.0
  %330 = vmatpush1.msra.mxu0 0.0
  %331 = vmatprep.subr.mxu0 0.0
  %332 = vmatpush1.msra.mxu0 0.0
  %333 = vmatprep.subr.mxu0 0.0
  %334 = vmatpush1.msra.mxu0 0.0
  %335 = vmatprep.subr.mxu0 0.0
  %336 = vmatpush1.msra.mxu0 0.0
  %337 = vmatprep.subr.mxu0 0.0
  %338 = vmatpush1.msra.mxu0 0.0
  %339 = vmatprep.subr.mxu0 0.0
  %340 = vmatpush1.msra.mxu0 0.0
  %341 = vmatprep.subr.mxu0 0.0
  %342 = vmatpush1.msra.mxu0 0.0
  %343 = vmatprep.subr.mxu0 0.0
  %344 = vmatpush1.msra.mxu0 0.0
  %345 = vmatprep.subr.mxu0 0.0
  %346 = vmatpush1.msra.mxu0 0.0
  %347 = vmatprep.subr.mxu0 0.0
  %348 = vmatpush1.msra.mxu0 0.0
  %349 = vmatprep.subr.mxu0 0.0
  %350 = vmatpush1.msra.mxu0 %v141
  %351 = vmatprep.subr.mxu0 0.0
  %352 = vmatpush1.msra.mxu0 %v140
  %353 = vmatprep.subr.mxu0 0.0
  %354 = vmatpush1.msra.mxu0 %v139
  %355 = vmatprep.subr.mxu0 0.0
  %356 = vmatpush1.msra.mxu0 %v138
  %357 = vmatprep.subr.mxu0 0.0
  %358 = vmatpush2.msra.mxu0 0.0
  %359 = vmatprep.subr.mxu0 0.0
  %360 = vmatpush2.msra.mxu0 0.0
  %361 = vmatprep.subr.mxu0 0.0
  %362 = vmatpush2.msra.mxu0 0.0
  %363 = vmatprep.subr.mxu0 0.0
  %364 = vmatpush2.msra.mxu0 0.0
  %365 = vmatprep.subr.mxu0 0.0
  %366 = vmatpush2.msra.mxu0 0.0
  %367 = vmatprep.subr.mxu0 0.0
  %368 = vmatpush2.msra.mxu0 0.0
  %369 = vmatprep.subr.mxu0 0.0
  %370 = vmatpush2.msra.mxu0 0.0
  %371 = vmatprep.subr.mxu0 0.0
  %372 = vmatpush2.msra.mxu0 0.0
  %373 = vmatprep.subr.mxu0 0.0
  %374 = vmatpush2.msra.mxu0 0.0
  %375 = vmatprep.subr.mxu0 0.0
  %376 = vmatpush2.msra.mxu0 0.0
  %377 = vmatprep.subr.mxu0 0.0
  %378 = vmatpush2.msra.mxu0 0.0
  %379 = vmatprep.subr.mxu0 0.0
  %380 = vmatpush2.msra.mxu0 0.0
  %381 = vmatprep.subr.mxu0 0.0
  %382 = vmatpush2.msra.mxu0 0.0
  %383 = vmatprep.subr.mxu0 0.0
  %384 = vmatpush2.msra.mxu0 0.0
  %385 = vmatprep.subr.mxu0 0.0
  %386 = vmatpush2.msra.mxu0 0.0
  %387 = vmatprep.subr.mxu0 0.0
  %388 = vmatpush2.msra.mxu0 0.0
  %389 = vmatprep.mubr.f32.mxu0 0.0
  %390 = vmatmul.mubr.f32.gmra.mxu0 %v323
  %v391 = vpop.f32.mrf.mxu0
  %v392 = vadd.f32 %v317, %v391
  %v393 = vpop.f32.mrf.mxu0
  %394 = vdwg.mxu0
  %v395 = vadd.f32 %v392, %v151
  %v396 = vmul.f32 %v395, 0.5
  %v397 = vtanh.pop %v396
  %v398 = vadd.f32 %v397, 1.0
  %v399 = vmul.f32 %v398, 0.5
  %v400 = vtanh.pop %v395
  %v401 = vmul.f32 %v399, 0.0
  %403 = vrot.lane.b32.xlu0 %v400, 32
  %v404 = vpop.permute.xlu0 %403
  %v406 = vmul.f32 %v399, %v404
  %408 = vrot.lane.b32.xlu0 %v406, 32
  %v409 = vpop.permute.xlu0 %408
  %v411 = vadd.f32 %v401, %v409
  %v412 = vtanh.pop %v411
  %414 = vrot.lane.b32.xlu0 %v412, 32
  %v415 = vpop.permute.xlu0 %414
  %v417 = vmul.f32 %v399, %v415
  %419 = vrot.lane.b32.xlu0 %v417, 64
  %v420 = vpop.permute.xlu0 %419
  %vm422 = vcmask 254976
  %423 = vst.msk [vmem:[#allocation2] sm:$0x3] %vm422, %v420
  %424 = vmatprep.subr.mxu0 0.0
  %425 = vmatpush1.msra.mxu0 0.0
  %426 = vmatprep.subr.mxu0 0.0
  %427 = vmatpush1.msra.mxu0 0.0
  %428 = vmatprep.subr.mxu0 0.0
  %429 = vmatpush1.msra.mxu0 0.0
  %430 = vmatprep.subr.mxu0 0.0
  %431 = vmatpush1.msra.mxu0 0.0
  %432 = vmatprep.subr.mxu0 0.0
  %433 = vmatpush1.msra.mxu0 0.0
  %434 = vmatprep.subr.mxu0 0.0
  %435 = vmatpush1.msra.mxu0 0.0
  %436 = vmatprep.subr.mxu0 0.0
  %437 = vmatpush1.msra.mxu0 0.0
  %438 = vmatprep.subr.mxu0 0.0
  %439 = vmatpush1.msra.mxu0 0.0
  %440 = vmatprep.subr.mxu0 0.0
  %441 = vmatpush1.msra.mxu0 0.0
  %442 = vmatprep.subr.mxu0 0.0
  %443 = vmatpush1.msra.mxu0 0.0
  %444 = vmatprep.subr.mxu0 0.0
  %445 = vmatpush1.msra.mxu0 0.0
  %446 = vmatprep.subr.mxu0 0.0
  %447 = vmatpush1.msra.mxu0 0.0
  %448 = vmatprep.subr.mxu0 0.0
  %449 = vmatpush1.msra.mxu0 %v137
  %450 = vmatprep.subr.mxu0 0.0
  %451 = vmatpush1.msra.mxu0 %v136
  %452 = vmatprep.subr.mxu0 0.0
  %453 = vmatpush1.msra.mxu0 %v135
  %454 = vmatprep.subr.mxu0 0.0
  %455 = vmatpush1.msra.mxu0 %v134
  %456 = vmatprep.subr.mxu0 0.0
  %457 = vmatpush2.msra.mxu0 0.0
  %458 = vmatprep.subr.mxu0 0.0
  %459 = vmatpush2.msra.mxu0 0.0
  %460 = vmatprep.subr.mxu0 0.0
  %461 = vmatpush2.msra.mxu0 0.0
  %462 = vmatprep.subr.mxu0 0.0
  %463 = vmatpush2.msra.mxu0 0.0
  %464 = vmatprep.subr.mxu0 0.0
  %465 = vmatpush2.msra.mxu0 0.0
  %466 = vmatprep.subr.mxu0 0.0
  %467 = vmatpush2.msra.mxu0 0.0
  %468 = vmatprep.subr.mxu0 0.0
  %469 = vmatpush2.msra.mxu0 0.0
  %470 = vmatprep.subr.mxu0 0.0
  %471 = vmatpush2.msra.mxu0 0.0
  %472 = vmatprep.subr.mxu0 0.0
  %473 = vmatpush2.msra.mxu0 0.0
  %474 = vmatprep.subr.mxu0 0.0
  %475 = vmatpush2.msra.mxu0 0.0
  %476 = vmatprep.subr.mxu0 0.0
  %477 = vmatpush2.msra.mxu0 0.0
  %478 = vmatprep.subr.mxu0 0.0
  %479 = vmatpush2.msra.mxu0 0.0
  %480 = vmatprep.subr.mxu0 0.0
  %481 = vmatpush2.msra.mxu0 0.0
  %482 = vmatprep.subr.mxu0 0.0
  %483 = vmatpush2.msra.mxu0 0.0
  %484 = vmatprep.subr.mxu0 0.0
  %485 = vmatpush2.msra.mxu0 0.0
  %486 = vmatprep.subr.mxu0 0.0
  %487 = vmatpush2.msra.mxu0 0.0
  %488 = vmatprep.mubr.f32.mxu0 0.0
  %489 = vmatmul.mubr.f32.gmra.mxu0 %v323
  %v490 = vpop.f32.mrf.mxu0
  %v491 = vadd.f32 0.0, %v490
  %v492 = vpop.f32.mrf.mxu0
  %493 = vdwg.mxu0
  %v495 = vrot.slane %v491, 6
  %v497 = vadd.f32 %v126, %v495
  %v498 = vmul.f32 %v497, 0.5
  %v499 = vtanh.pop %v498
  %v500 = vadd.f32 %v499, 1.0
  %v501 = vmul.f32 %v500, 0.5
  %v502 = vtanh.pop %v497
  %v504 = vrot.slane %v243, 6
  %v506 = vmul.f32 %v501, %v504
  %508 = vrot.lane.b32.xlu0 %v502, 32
  %v509 = vpop.permute.xlu0 %508
  %v511 = vmul.f32 %v501, %v509
  %513 = vrot.lane.b32.xlu0 %v511, 32
  %v514 = vpop.permute.xlu0 %513
  %v516 = vadd.f32 %v506, %v514
  %v517 = vtanh.pop %v516
  %519 = vrot.lane.b32.xlu0 %v517, 32
  %v520 = vpop.permute.xlu0 %519
  %v522 = vmul.f32 %v501, %v520
  %v523 = vsel %vm153, %v420, 0
  %525 = vmatprep.subr.mxu0 0.0
  %526 = vmatpush1.msra.mxu0 0.0
  %527 = vmatprep.subr.mxu0 0.0
  %528 = vmatpush1.msra.mxu0 0.0
  %529 = vmatprep.subr.mxu0 0.0
  %530 = vmatpush1.msra.mxu0 0.0
  %531 = vmatprep.subr.mxu0 0.0
  %532 = vmatpush1.msra.mxu0 0.0
  %533 = vmatprep.subr.mxu0 0.0
  %534 = vmatpush1.msra.mxu0 0.0
  %535 = vmatprep.subr.mxu0 0.0
  %536 = vmatpush1.msra.mxu0 0.0
  %537 = vmatprep.subr.mxu0 0.0
  %538 = vmatpush1.msra.mxu0 0.0
  %539 = vmatprep.subr.mxu0 0.0
  %540 = vmatpush1.msra.mxu0 0.0
  %541 = vmatprep.subr.mxu0 0.0
  %542 = vmatpush1.msra.mxu0 0.0
  %543 = vmatprep.subr.mxu0 0.0
  %544 = vmatpush1.msra.mxu0 0.0
  %545 = vmatprep.subr.mxu0 0.0
  %546 = vmatpush1.msra.mxu0 0.0
  %547 = vmatprep.subr.mxu0 0.0
  %548 = vmatpush1.msra.mxu0 0.0
  %549 = vmatprep.subr.mxu0 0.0
  %550 = vmatpush1.msra.mxu0 %v145
  %551 = vmatprep.subr.mxu0 0.0
  %552 = vmatpush1.msra.mxu0 %v144
  %553 = vmatprep.subr.mxu0 0.0
  %554 = vmatpush1.msra.mxu0 %v143
  %555 = vmatprep.subr.mxu0 0.0
  %556 = vmatpush1.msra.mxu0 %v142
  %557 = vmatprep.subr.mxu0 0.0
  %558 = vmatpush2.msra.mxu0 0.0
  %559 = vmatprep.subr.mxu0 0.0
  %560 = vmatpush2.msra.mxu0 0.0
  %561 = vmatprep.subr.mxu0 0.0
  %562 = vmatpush2.msra.mxu0 0.0
  %563 = vmatprep.subr.mxu0 0.0
  %564 = vmatpush2.msra.mxu0 0.0
  %565 = vmatprep.subr.mxu0 0.0
  %566 = vmatpush2.msra.mxu0 0.0
  %567 = vmatprep.subr.mxu0 0.0
  %568 = vmatpush2.msra.mxu0 0.0
  %569 = vmatprep.subr.mxu0 0.0
  %570 = vmatpush2.msra.mxu0 0.0
  %571 = vmatprep.subr.mxu0 0.0
  %572 = vmatpush2.msra.mxu0 0.0
  %573 = vmatprep.subr.mxu0 0.0
  %574 = vmatpush2.msra.mxu0 0.0
  %575 = vmatprep.subr.mxu0 0.0
  %576 = vmatpush2.msra.mxu0 0.0
  %577 = vmatprep.subr.mxu0 0.0
  %578 = vmatpush2.msra.mxu0 0.0
  %579 = vmatprep.subr.mxu0 0.0
  %580 = vmatpush2.msra.mxu0 0.0
  %581 = vmatprep.subr.mxu0 0.0
  %582 = vmatpush2.msra.mxu0 0.0
  %583 = vmatprep.subr.mxu0 0.0
  %584 = vmatpush2.msra.mxu0 0.0
  %585 = vmatprep.subr.mxu0 0.0
  %586 = vmatpush2.msra.mxu0 0.0
  %587 = vmatprep.subr.mxu0 0.0
  %588 = vmatpush2.msra.mxu0 0.0
  %589 = vmatprep.mubr.f32.mxu0 0.0
  %590 = vmatmul.mubr.f32.gmra.mxu0 %v523
  %v591 = vpop.f32.mrf.mxu0
  %v592 = vadd.f32 0.0, %v591
  %v593 = vpop.f32.mrf.mxu0
  %594 = vdwg.mxu0
  %v596 = vrot.slane %v522, 2
  %597 = vrot.lane.b32.xlu0 %v596, 64
  %v598 = vpop.permute.xlu0 %597
  %v599 = vsel %vm153, %v598, 0
  %601 = vmatprep.subr.mxu0 0.0
  %602 = vmatpush1.msra.mxu0 0.0
  %603 = vmatprep.subr.mxu0 0.0
  %604 = vmatpush1.msra.mxu0 0.0
  %605 = vmatprep.subr.mxu0 0.0
  %606 = vmatpush1.msra.mxu0 0.0
  %607 = vmatprep.subr.mxu0 0.0
  %608 = vmatpush1.msra.mxu0 0.0
  %609 = vmatprep.subr.mxu0 0.0
  %610 = vmatpush1.msra.mxu0 0.0
  %611 = vmatprep.subr.mxu0 0.0
  %612 = vmatpush1.msra.mxu0 0.0
  %613 = vmatprep.subr.mxu0 0.0
  %614 = vmatpush1.msra.mxu0 0.0
  %615 = vmatprep.subr.mxu0 0.0
  %616 = vmatpush1.msra.mxu0 0.0
  %617 = vmatprep.subr.mxu0 0.0
  %618 = vmatpush1.msra.mxu0 0.0
  %619 = vmatprep.subr.mxu0 0.0
  %620 = vmatpush1.msra.mxu0 0.0
  %621 = vmatprep.subr.mxu0 0.0
  %622 = vmatpush1.msra.mxu0 0.0
  %623 = vmatprep.subr.mxu0 0.0
  %624 = vmatpush1.msra.mxu0 0.0
  %625 = vmatprep.subr.mxu0 0.0
  %626 = vmatpush1.msra.mxu0 %v141
  %627 = vmatprep.subr.mxu0 0.0
  %628 = vmatpush1.msra.mxu0 %v140
  %629 = vmatprep.subr.mxu0 0.0
  %630 = vmatpush1.msra.mxu0 %v139
  %631 = vmatprep.subr.mxu0 0.0
  %632 = vmatpush1.msra.mxu0 %v138
  %633 = vmatprep.subr.mxu0 0.0
  %634 = vmatpush2.msra.mxu0 0.0
  %635 = vmatprep.subr.mxu0 0.0
  %636 = vmatpush2.msra.mxu0 0.0
  %637 = vmatprep.subr.mxu0 0.0
  %638 = vmatpush2.msra.mxu0 0.0
  %639 = vmatprep.subr.mxu0 0.0
  %640 = vmatpush2.msra.mxu0 0.0
  %641 = vmatprep.subr.mxu0 0.0
  %642 = vmatpush2.msra.mxu0 0.0
  %643 = vmatprep.subr.mxu0 0.0
  %644 = vmatpush2.msra.mxu0 0.0
  %645 = vmatprep.subr.mxu0 0.0
  %646 = vmatpush2.msra.mxu0 0.0
  %647 = vmatprep.subr.mxu0 0.0
  %648 = vmatpush2.msra.mxu0 0.0
  %649 = vmatprep.subr.mxu0 0.0
  %650 = vmatpush2.msra.mxu0 0.0
  %651 = vmatprep.subr.mxu0 0.0
  %652 = vmatpush2.msra.mxu0 0.0
  %653 = vmatprep.subr.mxu0 0.0
  %654 = vmatpush2.msra.mxu0 0.0
  %655 = vmatprep.subr.mxu0 0.0
  %656 = vmatpush2.msra.mxu0 0.0
  %657 = vmatprep.subr.mxu0 0.0
  %658 = vmatpush2.msra.mxu0 0.0
  %659 = vmatprep.subr.mxu0 0.0
  %660 = vmatpush2.msra.mxu0 0.0
  %661 = vmatprep.subr.mxu0 0.0
  %662 = vmatpush2.msra.mxu0 0.0
  %663 = vmatprep.subr.mxu0 0.0
  %664 = vmatpush2.msra.mxu0 0.0
  %665 = vmatprep.mubr.f32.mxu0 0.0
  %666 = vmatmul.mubr.f32.gmra.mxu0 %v599
  %v667 = vpop.f32.mrf.mxu0
  %v668 = vadd.f32 %v592, %v667
  %v669 = vpop.f32.mrf.mxu0
  %670 = vdwg.mxu0
  %v671 = vadd.f32 %v668, %v151
  %v672 = vmul.f32 %v671, 0.5
  %v673 = vtanh.pop %v672
  %v674 = vadd.f32 %v673, 1.0
  %v675 = vmul.f32 %v674, 0.5
  %v676 = vtanh.pop %v671
  %v677 = vmul.f32 %v675, %v411
  %679 = vrot.lane.b32.xlu0 %v676, 32
  %v680 = vpop.permute.xlu0 %679
  %v682 = vmul.f32 %v675, %v680
  %684 = vrot.lane.b32.xlu0 %v682, 32
  %v685 = vpop.permute.xlu0 %684
  %v687 = vadd.f32 %v677, %v685
  %v688 = vtanh.pop %v687
  %690 = vrot.lane.b32.xlu0 %v688, 32
  %v691 = vpop.permute.xlu0 %690
  %v693 = vmul.f32 %v675, %v691
  %695 = vrot.lane.b32.xlu0 %v693, 64
  %v696 = vpop.permute.xlu0 %695
  %698 = vst.msk [vmem:[#allocation2 + $0x2] sm:$0x3] %vm422, %v696
  %699 = vmatprep.subr.mxu0 0.0
  %700 = vmatpush1.msra.mxu0 0.0
  %701 = vmatprep.subr.mxu0 0.0
  %702 = vmatpush1.msra.mxu0 0.0
  %703 = vmatprep.subr.mxu0 0.0
  %704 = vmatpush1.msra.mxu0 0.0
  %705 = vmatprep.subr.mxu0 0.0
  %706 = vmatpush1.msra.mxu0 0.0
  %707 = vmatprep.subr.mxu0 0.0
  %708 = vmatpush1.msra.mxu0 0.0
  %709 = vmatprep.subr.mxu0 0.0
  %710 = vmatpush1.msra.mxu0 0.0
  %711 = vmatprep.subr.mxu0 0.0
  %712 = vmatpush1.msra.mxu0 0.0
  %713 = vmatprep.subr.mxu0 0.0
  %714 = vmatpush1.msra.mxu0 0.0
  %715 = vmatprep.subr.mxu0 0.0
  %716 = vmatpush1.msra.mxu0 0.0
  %717 = vmatprep.subr.mxu0 0.0
  %718 = vmatpush1.msra.mxu0 0.0
  %719 = vmatprep.subr.mxu0 0.0
  %720 = vmatpush1.msra.mxu0 0.0
  %721 = vmatprep.subr.mxu0 0.0
  %722 = vmatpush1.msra.mxu0 0.0
  %723 = vmatprep.subr.mxu0 0.0
  %724 = vmatpush1.msra.mxu0 %v137
  %725 = vmatprep.subr.mxu0 0.0
  %726 = vmatpush1.msra.mxu0 %v136
  %727 = vmatprep.subr.mxu0 0.0
  %728 = vmatpush1.msra.mxu0 %v135
  %729 = vmatprep.subr.mxu0 0.0
  %730 = vmatpush1.msra.mxu0 %v134
  %731 = vmatprep.subr.mxu0 0.0
  %732 = vmatpush2.msra.mxu0 0.0
  %733 = vmatprep.subr.mxu0 0.0
  %734 = vmatpush2.msra.mxu0 0.0
  %735 = vmatprep.subr.mxu0 0.0
  %736 = vmatpush2.msra.mxu0 0.0
  %737 = vmatprep.subr.mxu0 0.0
  %738 = vmatpush2.msra.mxu0 0.0
  %739 = vmatprep.subr.mxu0 0.0
  %740 = vmatpush2.msra.mxu0 0.0
  %741 = vmatprep.subr.mxu0 0.0
  %742 = vmatpush2.msra.mxu0 0.0
  %743 = vmatprep.subr.mxu0 0.0
  %744 = vmatpush2.msra.mxu0 0.0
  %745 = vmatprep.subr.mxu0 0.0
  %746 = vmatpush2.msra.mxu0 0.0
  %747 = vmatprep.subr.mxu0 0.0
  %748 = vmatpush2.msra.mxu0 0.0
  %749 = vmatprep.subr.mxu0 0.0
  %750 = vmatpush2.msra.mxu0 0.0
  %751 = vmatprep.subr.mxu0 0.0
  %752 = vmatpush2.msra.mxu0 0.0
  %753 = vmatprep.subr.mxu0 0.0
  %754 = vmatpush2.msra.mxu0 0.0
  %755 = vmatprep.subr.mxu0 0.0
  %756 = vmatpush2.msra.mxu0 0.0
  %757 = vmatprep.subr.mxu0 0.0
  %758 = vmatpush2.msra.mxu0 0.0
  %759 = vmatprep.subr.mxu0 0.0
  %760 = vmatpush2.msra.mxu0 0.0
  %761 = vmatprep.subr.mxu0 0.0
  %762 = vmatpush2.msra.mxu0 0.0
  %763 = vmatprep.mubr.f32.mxu0 0.0
  %764 = vmatmul.mubr.f32.gmra.mxu0 %v599
  %v765 = vpop.f32.mrf.mxu0
  %v766 = vadd.f32 0.0, %v765
  %v767 = vpop.f32.mrf.mxu0
  %768 = vdwg.mxu0
  %v770 = vrot.slane %v766, 4
  %v772 = vadd.f32 %v126, %v770
  %v773 = vmul.f32 %v772, 0.5
  %v774 = vtanh.pop %v773
  %v775 = vadd.f32 %v774, 1.0
  %v776 = vmul.f32 %v775, 0.5
  %v777 = vtanh.pop %v772
  %v779 = vrot.slane %v516, 6
  %v781 = vmul.f32 %v776, %v779
  %783 = vrot.lane.b32.xlu0 %v777, 32
  %v784 = vpop.permute.xlu0 %783
  %v786 = vmul.f32 %v776, %v784
  %788 = vrot.lane.b32.xlu0 %v786, 32
  %v789 = vpop.permute.xlu0 %788
  %v791 = vadd.f32 %v781, %v789
  %v792 = vtanh.pop %v791
  %794 = vrot.lane.b32.xlu0 %v792, 32
  %v795 = vpop.permute.xlu0 %794
  %v797 = vmul.f32 %v776, %v795
  %v798 = vsel %vm153, %v696, 0
  %800 = vmatprep.subr.mxu0 0.0
  %801 = vmatpush1.msra.mxu0 0.0
  %802 = vmatprep.subr.mxu0 0.0
  %803 = vmatpush1.msra.mxu0 0.0
  %804 = vmatprep.subr.mxu0 0.0
  %805 = vmatpush1.msra.mxu0 0.0
  %806 = vmatprep.subr.mxu0 0.0
  %807 = vmatpush1.msra.mxu0 0.0
  %808 = vmatprep.subr.mxu0 0.0
  %809 = vmatpush1.msra.mxu0 0.0
  %810 = vmatprep.subr.mxu0 0.0
  %811 = vmatpush1.msra.mxu0 0.0
  %812 = vmatprep.subr.mxu0 0.0
  %813 = vmatpush1.msra.mxu0 0.0
  %814 = vmatprep.subr.mxu0 0.0
  %815 = vmatpush1.msra.mxu0 0.0
  %816 = vmatprep.subr.mxu0 0.0
  %817 = vmatpush1.msra.mxu0 0.0
  %818 = vmatprep.subr.mxu0 0.0
  %819 = vmatpush1.msra.mxu0 0.0
  %820 = vmatprep.subr.mxu0 0.0
  %821 = vmatpush1.msra.mxu0 0.0
  %822 = vmatprep.subr.mxu0 0.0
  %823 = vmatpush1.msra.mxu0 0.0
  %824 = vmatprep.subr.mxu0 0.0
  %825 = vmatpush1.msra.mxu0 %v145
  %826 = vmatprep.subr.mxu0 0.0
  %827 = vmatpush1.msra.mxu0 %v144
  %828 = vmatprep.subr.mxu0 0.0
  %829 = vmatpush1.msra.mxu0 %v143
  %830 = vmatprep.subr.mxu0 0.0
  %831 = vmatpush1.msra.mxu0 %v142
  %832 = vmatprep.subr.mxu0 0.0
  %833 = vmatpush2.msra.mxu0 0.0
  %834 = vmatprep.subr.mxu0 0.0
  %835 = vmatpush2.msra.mxu0 0.0
  %836 = vmatprep.subr.mxu0 0.0
  %837 = vmatpush2.msra.mxu0 0.0
  %838 = vmatprep.subr.mxu0 0.0
  %839 = vmatpush2.msra.mxu0 0.0
  %840 = vmatprep.subr.mxu0 0.0
  %841 = vmatpush2.msra.mxu0 0.0
  %842 = vmatprep.subr.mxu0 0.0
  %843 = vmatpush2.msra.mxu0 0.0
  %844 = vmatprep.subr.mxu0 0.0
  %845 = vmatpush2.msra.mxu0 0.0
  %846 = vmatprep.subr.mxu0 0.0
  %847 = vmatpush2.msra.mxu0 0.0
  %848 = vmatprep.subr.mxu0 0.0
  %849 = vmatpush2.msra.mxu0 0.0
  %850 = vmatprep.subr.mxu0 0.0
  %851 = vmatpush2.msra.mxu0 0.0
  %852 = vmatprep.subr.mxu0 0.0
  %853 = vmatpush2.msra.mxu0 0.0
  %854 = vmatprep.subr.mxu0 0.0
  %855 = vmatpush2.msra.mxu0 0.0
  %856 = vmatprep.subr.mxu0 0.0
  %857 = vmatpush2.msra.mxu0 0.0
  %858 = vmatprep.subr.mxu0 0.0
  %859 = vmatpush2.msra.mxu0 0.0
  %860 = vmatprep.subr.mxu0 0.0
  %861 = vmatpush2.msra.mxu0 0.0
  %862 = vmatprep.subr.mxu0 0.0
  %863 = vmatpush2.msra.mxu0 0.0
  %864 = vmatprep.mubr.f32.mxu0 0.0
  %865 = vmatmul.mubr.f32.gmra.mxu0 %v798
  %v866 = vpop.f32.mrf.mxu0
  %v867 = vadd.f32 0.0, %v866
  %v868 = vpop.f32.mrf.mxu0
  %869 = vdwg.mxu0
  %v871 = vrot.slane %v797, 4
  %872 = vrot.lane.b32.xlu0 %v871, 64
  %v873 = vpop.permute.xlu0 %872
  %v874 = vsel %vm153, %v873, 0
  %876 = vmatprep.subr.mxu0 0.0
  %877 = vmatpush1.msra.mxu0 0.0
  %878 = vmatprep.subr.mxu0 0.0
  %879 = vmatpush1.msra.mxu0 0.0
  %880 = vmatprep.subr.mxu0 0.0
  %881 = vmatpush1.msra.mxu0 0.0
  %882 = vmatprep.subr.mxu0 0.0
  %883 = vmatpush1.msra.mxu0 0.0
  %884 = vmatprep.subr.mxu0 0.0
  %885 = vmatpush1.msra.mxu0 0.0
  %886 = vmatprep.subr.mxu0 0.0
  %887 = vmatpush1.msra.mxu0 0.0
  %888 = vmatprep.subr.mxu0 0.0
  %889 = vmatpush1.msra.mxu0 0.0
  %890 = vmatprep.subr.mxu0 0.0
  %891 = vmatpush1.msra.mxu0 0.0
  %892 = vmatprep.subr.mxu0 0.0
  %893 = vmatpush1.msra.mxu0 0.0
  %894 = vmatprep.subr.mxu0 0.0
  %895 = vmatpush1.msra.mxu0 0.0
  %896 = vmatprep.subr.mxu0 0.0
  %897 = vmatpush1.msra.mxu0 0.0
  %898 = vmatprep.subr.mxu0 0.0
  %899 = vmatpush1.msra.mxu0 0.0
  %900 = vmatprep.subr.mxu0 0.0
  %901 = vmatpush1.msra.mxu0 %v141
  %902 = vmatprep.subr.mxu0 0.0
  %903 = vmatpush1.msra.mxu0 %v140
  %904 = vmatprep.subr.mxu0 0.0
  %905 = vmatpush1.msra.mxu0 %v139
  %906 = vmatprep.subr.mxu0 0.0
  %907 = vmatpush1.msra.mxu0 %v138
  %908 = vmatprep.subr.mxu0 0.0
  %909 = vmatpush2.msra.mxu0 0.0
  %910 = vmatprep.subr.mxu0 0.0
  %911 = vmatpush2.msra.mxu0 0.0
  %912 = vmatprep.subr.mxu0 0.0
  %913 = vmatpush2.msra.mxu0 0.0
  %914 = vmatprep.subr.mxu0 0.0
  %915 = vmatpush2.msra.mxu0 0.0
  %916 = vmatprep.subr.mxu0 0.0
  %917 = vmatpush2.msra.mxu0 0.0
  %918 = vmatprep.subr.mxu0 0.0
  %919 = vmatpush2.msra.mxu0 0.0
  %920 = vmatprep.subr.mxu0 0.0
  %921 = vmatpush2.msra.mxu0 0.0
  %922 = vmatprep.subr.mxu0 0.0
  %923 = vmatpush2.msra.mxu0 0.0
  %924 = vmatprep.subr.mxu0 0.0
  %925 = vmatpush2.msra.mxu0 0.0
  %926 = vmatprep.subr.mxu0 0.0
  %927 = vmatpush2.msra.mxu0 0.0
  %928 = vmatprep.subr.mxu0 0.0
  %929 = vmatpush2.msra.mxu0 0.0
  %930 = vmatprep.subr.mxu0 0.0
  %931 = vmatpush2.msra.mxu0 0.0
  %932 = vmatprep.subr.mxu0 0.0
  %933 = vmatpush2.msra.mxu0 0.0
  %934 = vmatprep.subr.mxu0 0.0
  %935 = vmatpush2.msra.mxu0 0.0
  %936 = vmatprep.subr.mxu0 0.0
  %937 = vmatpush2.msra.mxu0 0.0
  %938 = vmatprep.subr.mxu0 0.0
  %939 = vmatpush2.msra.mxu0 0.0
  %940 = vmatprep.mubr.f32.mxu0 0.0
  %941 = vmatmul.mubr.f32.gmra.mxu0 %v874
  %v942 = vpop.f32.mrf.mxu0
  %v943 = vadd.f32 %v867, %v942
  %v944 = vpop.f32.mrf.mxu0
  %945 = vdwg.mxu0
  %v946 = vadd.f32 %v943, %v151
  %v947 = vmul.f32 %v946, 0.5
  %v948 = vtanh.pop %v947
  %v949 = vadd.f32 %v948, 1.0
  %v950 = vmul.f32 %v949, 0.5
  %v951 = vtanh.pop %v946
  %v952 = vmul.f32 %v950, %v687
  %954 = vrot.lane.b32.xlu0 %v951, 32
  %v955 = vpop.permute.xlu0 %954
  %v957 = vmul.f32 %v950, %v955
  %959 = vrot.lane.b32.xlu0 %v957, 32
  %v960 = vpop.permute.xlu0 %959
  %v962 = vadd.f32 %v952, %v960
  %v963 = vtanh.pop %v962
  %965 = vrot.lane.b32.xlu0 %v963, 32
  %v966 = vpop.permute.xlu0 %965
  %v968 = vmul.f32 %v950, %v966
  %970 = vrot.lane.b32.xlu0 %v968, 64
  %v971 = vpop.permute.xlu0 %970
  %973 = vst.msk [vmem:[#allocation2 + $0x4] sm:$0x3] %vm422, %v971
  %974 = vmatprep.subr.mxu0 0.0
  %975 = vmatpush1.msra.mxu0 0.0
  %976 = vmatprep.subr.mxu0 0.0
  %977 = vmatpush1.msra.mxu0 0.0
  %978 = vmatprep.subr.mxu0 0.0
  %979 = vmatpush1.msra.mxu0 0.0
  %980 = vmatprep.subr.mxu0 0.0
  %981 = vmatpush1.msra.mxu0 0.0
  %982 = vmatprep.subr.mxu0 0.0
  %983 = vmatpush1.msra.mxu0 0.0
  %984 = vmatprep.subr.mxu0 0.0
  %985 = vmatpush1.msra.mxu0 0.0
  %986 = vmatprep.subr.mxu0 0.0
  %987 = vmatpush1.msra.mxu0 0.0
  %988 = vmatprep.subr.mxu0 0.0
  %989 = vmatpush1.msra.mxu0 0.0
  %990 = vmatprep.subr.mxu0 0.0
  %991 = vmatpush1.msra.mxu0 0.0
  %992 = vmatprep.subr.mxu0 0.0
  %993 = vmatpush1.msra.mxu0 0.0
  %994 = vmatprep.subr.mxu0 0.0
  %995 = vmatpush1.msra.mxu0 0.0
  %996 = vmatprep.subr.mxu0 0.0
  %997 = vmatpush1.msra.mxu0 0.0
  %998 = vmatprep.subr.mxu0 0.0
  %999 = vmatpush1.msra.mxu0 %v137
  %1000 = vmatprep.subr.mxu0 0.0
  %1001 = vmatpush1.msra.mxu0 %v136
  %1002 = vmatprep.subr.mxu0 0.0
  %1003 = vmatpush1.msra.mxu0 %v135
  %1004 = vmatprep.subr.mxu0 0.0
  %1005 = vmatpush1.msra.mxu0 %v134
  %1006 = vmatprep.subr.mxu0 0.0
  %1007 = vmatpush2.msra.mxu0 0.0
  %1008 = vmatprep.subr.mxu0 0.0
  %1009 = vmatpush2.msra.mxu0 0.0
  %1010 = vmatprep.subr.mxu0 0.0
  %1011 = vmatpush2.msra.mxu0 0.0
  %1012 = vmatprep.subr.mxu0 0.0
  %1013 = vmatpush2.msra.mxu0 0.0
  %1014 = vmatprep.subr.mxu0 0.0
  %1015 = vmatpush2.msra.mxu0 0.0
  %1016 = vmatprep.subr.mxu0 0.0
  %1017 = vmatpush2.msra.mxu0 0.0
  %1018 = vmatprep.subr.mxu0 0.0
  %1019 = vmatpush2.msra.mxu0 0.0
  %1020 = vmatprep.subr.mxu0 0.0
  %1021 = vmatpush2.msra.mxu0 0.0
  %1022 = vmatprep.subr.mxu0 0.0
  %1023 = vmatpush2.msra.mxu0 0.0
  %1024 = vmatprep.subr.mxu0 0.0
  %1025 = vmatpush2.msra.mxu0 0.0
  %1026 = vmatprep.subr.mxu0 0.0
  %1027 = vmatpush2.msra.mxu0 0.0
  %1028 = vmatprep.subr.mxu0 0.0
  %1029 = vmatpush2.msra.mxu0 0.0
  %1030 = vmatprep.subr.mxu0 0.0
  %1031 = vmatpush2.msra.mxu0 0.0
  %1032 = vmatprep.subr.mxu0 0.0
  %1033 = vmatpush2.msra.mxu0 0.0
  %1034 = vmatprep.subr.mxu0 0.0
  %1035 = vmatpush2.msra.mxu0 0.0
  %1036 = vmatprep.subr.mxu0 0.0
  %1037 = vmatpush2.msra.mxu0 0.0
  %1038 = vmatprep.mubr.f32.mxu0 0.0
  %1039 = vmatmul.mubr.f32.gmra.mxu0 %v874
  %v1040 = vpop.f32.mrf.mxu0
  %v1041 = vadd.f32 0.0, %v1040
  %v1042 = vpop.f32.mrf.mxu0
  %1043 = vdwg.mxu0
  %v1045 = vrot.slane %v1041, 2
  %v1047 = vadd.f32 %v126, %v1045
  %v1048 = vmul.f32 %v1047, 0.5
  %v1049 = vtanh.pop %v1048
  %v1050 = vadd.f32 %v1049, 1.0
  %v1051 = vmul.f32 %v1050, 0.5
  %v1052 = vtanh.pop %v1047
  %v1054 = vrot.slane %v791, 6
  %v1056 = vmul.f32 %v1051, %v1054
  %1058 = vrot.lane.b32.xlu0 %v1052, 32
  %v1059 = vpop.permute.xlu0 %1058
  %v1061 = vmul.f32 %v1051, %v1059
  %1063 = vrot.lane.b32.xlu0 %v1061, 32
  %v1064 = vpop.permute.xlu0 %1063
  %v1066 = vadd.f32 %v1056, %v1064
  %v1067 = vtanh.pop %v1066
  %1069 = vrot.lane.b32.xlu0 %v1067, 32
  %v1070 = vpop.permute.xlu0 %1069
  %v1072 = vmul.f32 %v1051, %v1070
  %v1073 = vsel %vm153, %v971, 0
  %1075 = vmatprep.subr.mxu0 0.0
  %1076 = vmatpush1.msra.mxu0 0.0
  %1077 = vmatprep.subr.mxu0 0.0
  %1078 = vmatpush1.msra.mxu0 0.0
  %1079 = vmatprep.subr.mxu0 0.0
  %1080 = vmatpush1.msra.mxu0 0.0
  %1081 = vmatprep.subr.mxu0 0.0
  %1082 = vmatpush1.msra.mxu0 0.0
  %1083 = vmatprep.subr.mxu0 0.0
  %1084 = vmatpush1.msra.mxu0 0.0
  %1085 = vmatprep.subr.mxu0 0.0
  %1086 = vmatpush1.msra.mxu0 0.0
  %1087 = vmatprep.subr.mxu0 0.0
  %1088 = vmatpush1.msra.mxu0 0.0
  %1089 = vmatprep.subr.mxu0 0.0
  %1090 = vmatpush1.msra.mxu0 0.0
  %1091 = vmatprep.subr.mxu0 0.0
  %1092 = vmatpush1.msra.mxu0 0.0
  %1093 = vmatprep.subr.mxu0 0.0
  %1094 = vmatpush1.msra.mxu0 0.0
  %1095 = vmatprep.subr.mxu0 0.0
  %1096 = vmatpush1.msra.mxu0 0.0
  %1097 = vmatprep.subr.mxu0 0.0
  %1098 = vmatpush1.msra.mxu0 0.0
  %1099 = vmatprep.subr.mxu0 0.0
  %1100 = vmatpush1.msra.mxu0 %v145
  %1101 = vmatprep.subr.mxu0 0.0
  %1102 = vmatpush1.msra.mxu0 %v144
  %1103 = vmatprep.subr.mxu0 0.0
  %1104 = vmatpush1.msra.mxu0 %v143
  %1105 = vmatprep.subr.mxu0 0.0
  %1106 = vmatpush1.msra.mxu0 %v142
  %1107 = vmatprep.subr.mxu0 0.0
  %1108 = vmatpush2.msra.mxu0 0.0
  %1109 = vmatprep.subr.mxu0 0.0
  %1110 = vmatpush2.msra.mxu0 0.0
  %1111 = vmatprep.subr.mxu0 0.0
  %1112 = vmatpush2.msra.mxu0 0.0
  %1113 = vmatprep.subr.mxu0 0.0
  %1114 = vmatpush2.msra.mxu0 0.0
  %1115 = vmatprep.subr.mxu0 0.0
  %1116 = vmatpush2.msra.mxu0 0.0
  %1117 = vmatprep.subr.mxu0 0.0
  %1118 = vmatpush2.msra.mxu0 0.0
  %1119 = vmatprep.subr.mxu0 0.0
  %1120 = vmatpush2.msra.mxu0 0.0
  %1121 = vmatprep.subr.mxu0 0.0
  %1122 = vmatpush2.msra.mxu0 0.0
  %1123 = vmatprep.subr.mxu0 0.0
  %1124 = vmatpush2.msra.mxu0 0.0
  %1125 = vmatprep.subr.mxu0 0.0
  %1126 = vmatpush2.msra.mxu0 0.0
  %1127 = vmatprep.subr.mxu0 0.0
  %1128 = vmatpush2.msra.mxu0 0.0
  %1129 = vmatprep.subr.mxu0 0.0
  %1130 = vmatpush2.msra.mxu0 0.0
  %1131 = vmatprep.subr.mxu0 0.0
  %1132 = vmatpush2.msra.mxu0 0.0
  %1133 = vmatprep.subr.mxu0 0.0
  %1134 = vmatpush2.msra.mxu0 0.0
  %1135 = vmatprep.subr.mxu0 0.0
  %1136 = vmatpush2.msra.mxu0 0.0
  %1137 = vmatprep.subr.mxu0 0.0
  %1138 = vmatpush2.msra.mxu0 0.0
  %1139 = vmatprep.mubr.f32.mxu0 0.0
  %1140 = vmatmul.mubr.f32.gmra.mxu0 %v1073
  %v1141 = vpop.f32.mrf.mxu0
  %v1142 = vadd.f32 0.0, %v1141
  %v1143 = vpop.f32.mrf.mxu0
  %1144 = vdwg.mxu0
  %v1146 = vrot.slane %v1072, 6
  %1147 = vrot.lane.b32.xlu0 %v1146, 64
  %v1148 = vpop.permute.xlu0 %1147
  %v1149 = vsel %vm153, %v1148, 0
  %1151 = vmatprep.subr.mxu0 0.0
  %1152 = vmatpush1.msra.mxu0 0.0
  %1153 = vmatprep.subr.mxu0 0.0
  %1154 = vmatpush1.msra.mxu0 0.0
  %1155 = vmatprep.subr.mxu0 0.0
  %1156 = vmatpush1.msra.mxu0 0.0
  %1157 = vmatprep.subr.mxu0 0.0
  %1158 = vmatpush1.msra.mxu0 0.0
  %1159 = vmatprep.subr.mxu0 0.0
  %1160 = vmatpush1.msra.mxu0 0.0
  %1161 = vmatprep.subr.mxu0 0.0
  %1162 = vmatpush1.msra.mxu0 0.0
  %1163 = vmatprep.subr.mxu0 0.0
  %1164 = vmatpush1.msra.mxu0 0.0
  %1165 = vmatprep.subr.mxu0 0.0
  %1166 = vmatpush1.msra.mxu0 0.0
  %1167 = vmatprep.subr.mxu0 0.0
  %1168 = vmatpush1.msra.mxu0 0.0
  %1169 = vmatprep.subr.mxu0 0.0
  %1170 = vmatpush1.msra.mxu0 0.0
  %1171 = vmatprep.subr.mxu0 0.0
  %1172 = vmatpush1.msra.mxu0 0.0
  %1173 = vmatprep.subr.mxu0 0.0
  %1174 = vmatpush1.msra.mxu0 0.0
  %1175 = vmatprep.subr.mxu0 0.0
  %1176 = vmatpush1.msra.mxu0 %v141
  %1177 = vmatprep.subr.mxu0 0.0
  %1178 = vmatpush1.msra.mxu0 %v140
  %1179 = vmatprep.subr.mxu0 0.0
  %1180 = vmatpush1.msra.mxu0 %v139
  %1181 = vmatprep.subr.mxu0 0.0
  %1182 = vmatpush1.msra.mxu0 %v138
  %1183 = vmatprep.subr.mxu0 0.0
  %1184 = vmatpush2.msra.mxu0 0.0
  %1185 = vmatprep.subr.mxu0 0.0
  %1186 = vmatpush2.msra.mxu0 0.0
  %1187 = vmatprep.subr.mxu0 0.0
  %1188 = vmatpush2.msra.mxu0 0.0
  %1189 = vmatprep.subr.mxu0 0.0
  %1190 = vmatpush2.msra.mxu0 0.0
  %1191 = vmatprep.subr.mxu0 0.0
  %1192 = vmatpush2.msra.mxu0 0.0
  %1193 = vmatprep.subr.mxu0 0.0
  %1194 = vmatpush2.msra.mxu0 0.0
  %1195 = vmatprep.subr.mxu0 0.0
  %1196 = vmatpush2.msra.mxu0 0.0
  %1197 = vmatprep.subr.mxu0 0.0
  %1198 = vmatpush2.msra.mxu0 0.0
  %1199 = vmatprep.subr.mxu0 0.0
  %1200 = vmatpush2.msra.mxu0 0.0
  %1201 = vmatprep.subr.mxu0 0.0
  %1202 = vmatpush2.msra.mxu0 0.0
  %1203 = vmatprep.subr.mxu0 0.0
  %1204 = vmatpush2.msra.mxu0 0.0
  %1205 = vmatprep.subr.mxu0 0.0
  %1206 = vmatpush2.msra.mxu0 0.0
  %1207 = vmatprep.subr.mxu0 0.0
  %1208 = vmatpush2.msra.mxu0 0.0
  %1209 = vmatprep.subr.mxu0 0.0
  %1210 = vmatpush2.msra.mxu0 0.0
  %1211 = vmatprep.subr.mxu0 0.0
  %1212 = vmatpush2.msra.mxu0 0.0
  %1213 = vmatprep.subr.mxu0 0.0
  %1214 = vmatpush2.msra.mxu0 0.0
  %1215 = vmatprep.mubr.f32.mxu0 0.0
  %1216 = vmatmul.mubr.f32.gmra.mxu0 %v1149
  %v1217 = vpop.f32.mrf.mxu0
  %v1218 = vadd.f32 %v1142, %v1217
  %v1219 = vpop.f32.mrf.mxu0
  %1220 = vdwg.mxu0
  %v1221 = vadd.f32 %v1218, %v151
  %v1222 = vmul.f32 %v1221, 0.5
  %v1223 = vtanh.pop %v1222
  %v1224 = vadd.f32 %v1223, 1.0
  %v1225 = vmul.f32 %v1224, 0.5
  %v1226 = vtanh.pop %v1221
  %v1227 = vmul.f32 %v1225, %v962
  %1229 = vrot.lane.b32.xlu0 %v1226, 32
  %v1230 = vpop.permute.xlu0 %1229
  %v1232 = vmul.f32 %v1225, %v1230
  %1234 = vrot.lane.b32.xlu0 %v1232, 32
  %v1235 = vpop.permute.xlu0 %1234
  %v1237 = vadd.f32 %v1227, %v1235
  %v1238 = vtanh.pop %v1237
  %1240 = vrot.lane.b32.xlu0 %v1238, 32
  %v1241 = vpop.permute.xlu0 %1240
  %v1243 = vmul.f32 %v1225, %v1241
  %1245 = vrot.lane.b32.xlu0 %v1243, 64
  %v1246 = vpop.permute.xlu0 %1245
  %1248 = vst.msk [vmem:[#allocation2 + $0x6] sm:$0x3] %vm422, %v1246
  %1249 = vmatprep.subr.mxu0 0.0
  %1250 = vmatpush1.msra.mxu0 0.0
  %1251 = vmatprep.subr.mxu0 0.0
  %1252 = vmatpush1.msra.mxu0 0.0
  %1253 = vmatprep.subr.mxu0 0.0
  %1254 = vmatpush1.msra.mxu0 0.0
  %1255 = vmatprep.subr.mxu0 0.0
  %1256 = vmatpush1.msra.mxu0 0.0
  %1257 = vmatprep.subr.mxu0 0.0
  %1258 = vmatpush1.msra.mxu0 0.0
  %1259 = vmatprep.subr.mxu0 0.0
  %1260 = vmatpush1.msra.mxu0 0.0
  %1261 = vmatprep.subr.mxu0 0.0
  %1262 = vmatpush1.msra.mxu0 0.0
  %1263 = vmatprep.subr.mxu0 0.0
  %1264 = vmatpush1.msra.mxu0 0.0
  %1265 = vmatprep.subr.mxu0 0.0
  %1266 = vmatpush1.msra.mxu0 0.0
  %1267 = vmatprep.subr.mxu0 0.0
  %1268 = vmatpush1.msra.mxu0 0.0
  %1269 = vmatprep.subr.mxu0 0.0
  %1270 = vmatpush1.msra.mxu0 0.0
  %1271 = vmatprep.subr.mxu0 0.0
  %1272 = vmatpush1.msra.mxu0 0.0
  %1273 = vmatprep.subr.mxu0 0.0
  %1274 = vmatpush1.msra.mxu0 %v137
  %1275 = vmatprep.subr.mxu0 0.0
  %1276 = vmatpush1.msra.mxu0 %v136
  %1277 = vmatprep.subr.mxu0 0.0
  %1278 = vmatpush1.msra.mxu0 %v135
  %1279 = vmatprep.subr.mxu0 0.0
  %1280 = vmatpush1.msra.mxu0 %v134
  %1281 = vmatprep.subr.mxu0 0.0
  %1282 = vmatpush2.msra.mxu0 0.0
  %1283 = vmatprep.subr.mxu0 0.0
  %1284 = vmatpush2.msra.mxu0 0.0
  %1285 = vmatprep.subr.mxu0 0.0
  %1286 = vmatpush2.msra.mxu0 0.0
  %1287 = vmatprep.subr.mxu0 0.0
  %1288 = vmatpush2.msra.mxu0 0.0
  %1289 = vmatprep.subr.mxu0 0.0
  %1290 = vmatpush2.msra.mxu0 0.0
  %1291 = vmatprep.subr.mxu0 0.0
  %1292 = vmatpush2.msra.mxu0 0.0
  %1293 = vmatprep.subr.mxu0 0.0
  %1294 = vmatpush2.msra.mxu0 0.0
  %1295 = vmatprep.subr.mxu0 0.0
  %1296 = vmatpush2.msra.mxu0 0.0
  %1297 = vmatprep.subr.mxu0 0.0
  %1298 = vmatpush2.msra.mxu0 0.0
  %1299 = vmatprep.subr.mxu0 0.0
  %1300 = vmatpush2.msra.mxu0 0.0
  %1301 = vmatprep.subr.mxu0 0.0
  %1302 = vmatpush2.msra.mxu0 0.0
  %1303 = vmatprep.subr.mxu0 0.0
  %1304 = vmatpush2.msra.mxu0 0.0
  %1305 = vmatprep.subr.mxu0 0.0
  %1306 = vmatpush2.msra.mxu0 0.0
  %1307 = vmatprep.subr.mxu0 0.0
  %1308 = vmatpush2.msra.mxu0 0.0
  %1309 = vmatprep.subr.mxu0 0.0
  %1310 = vmatpush2.msra.mxu0 0.0
  %1311 = vmatprep.subr.mxu0 0.0
  %1312 = vmatpush2.msra.mxu0 0.0
  %1313 = vmatprep.mubr.f32.mxu0 0.0
  %1314 = vmatmul.mubr.f32.gmra.mxu0 %v1149
  %v1315 = vpop.f32.mrf.mxu0
  %v1316 = vadd.f32 0.0, %v1315
  %v1317 = vpop.f32.mrf.mxu0
  %1318 = vdwg.mxu0
  %v1319 = vadd.f32 %v131, %v1316
  %v1320 = vmul.f32 %v1319, 0.5
  %v1321 = vtanh.pop %v1320
  %v1322 = vadd.f32 %v1321, 1.0
  %v1323 = vmul.f32 %v1322, 0.5
  %v1324 = vtanh.pop %v1319
  %v1326 = vrot.slane %v1066, 6
  %v1328 = vmul.f32 %v1323, %v1326
  %1330 = vrot.lane.b32.xlu0 %v1324, 32
  %v1331 = vpop.permute.xlu0 %1330
  %v1333 = vmul.f32 %v1323, %v1331
  %1335 = vrot.lane.b32.xlu0 %v1333, 32
  %v1336 = vpop.permute.xlu0 %1335
  %v1338 = vadd.f32 %v1328, %v1336
  %v1339 = vtanh.pop %v1338
  %1341 = vrot.lane.b32.xlu0 %v1339, 32
  %v1342 = vpop.permute.xlu0 %1341
  %v1344 = vmul.f32 %v1323, %v1342
  %v1345 = vsel %vm153, %v1246, 0
  %1347 = vmatprep.subr.mxu0 0.0
  %1348 = vmatpush1.msra.mxu0 0.0
  %1349 = vmatprep.subr.mxu0 0.0
  %1350 = vmatpush1.msra.mxu0 0.0
  %1351 = vmatprep.subr.mxu0 0.0
  %1352 = vmatpush1.msra.mxu0 0.0
  %1353 = vmatprep.subr.mxu0 0.0
  %1354 = vmatpush1.msra.mxu0 0.0
  %1355 = vmatprep.subr.mxu0 0.0
  %1356 = vmatpush1.msra.mxu0 0.0
  %1357 = vmatprep.subr.mxu0 0.0
  %1358 = vmatpush1.msra.mxu0 0.0
  %1359 = vmatprep.subr.mxu0 0.0
  %1360 = vmatpush1.msra.mxu0 0.0
  %1361 = vmatprep.subr.mxu0 0.0
  %1362 = vmatpush1.msra.mxu0 0.0
  %1363 = vmatprep.subr.mxu0 0.0
  %1364 = vmatpush1.msra.mxu0 0.0
  %1365 = vmatprep.subr.mxu0 0.0
  %1366 = vmatpush1.msra.mxu0 0.0
  %1367 = vmatprep.subr.mxu0 0.0
  %1368 = vmatpush1.msra.mxu0 0.0
  %1369 = vmatprep.subr.mxu0 0.0
  %1370 = vmatpush1.msra.mxu0 0.0
  %1371 = vmatprep.subr.mxu0 0.0
  %1372 = vmatpush1.msra.mxu0 %v145
  %1373 = vmatprep.subr.mxu0 0.0
  %1374 = vmatpush1.msra.mxu0 %v144
  %1375 = vmatprep.subr.mxu0 0.0
  %1376 = vmatpush1.msra.mxu0 %v143
  %1377 = vmatprep.subr.mxu0 0.0
  %1378 = vmatpush1.msra.mxu0 %v142
  %1379 = vmatprep.subr.mxu0 0.0
  %1380 = vmatpush2.msra.mxu0 0.0
  %1381 = vmatprep.subr.mxu0 0.0
  %1382 = vmatpush2.msra.mxu0 0.0
  %1383 = vmatprep.subr.mxu0 0.0
  %1384 = vmatpush2.msra.mxu0 0.0
  %1385 = vmatprep.subr.mxu0 0.0
  %1386 = vmatpush2.msra.mxu0 0.0
  %1387 = vmatprep.subr.mxu0 0.0
  %1388 = vmatpush2.msra.mxu0 0.0
  %1389 = vmatprep.subr.mxu0 0.0
  %1390 = vmatpush2.msra.mxu0 0.0
  %1391 = vmatprep.subr.mxu0 0.0
  %1392 = vmatpush2.msra.mxu0 0.0
  %1393 = vmatprep.subr.mxu0 0.0
  %1394 = vmatpush2.msra.mxu0 0.0
  %1395 = vmatprep.subr.mxu0 0.0
  %1396 = vmatpush2.msra.mxu0 0.0
  %1397 = vmatprep.subr.mxu0 0.0
  %1398 = vmatpush2.msra.mxu0 0.0
  %1399 = vmatprep.subr.mxu0 0.0
  %1400 = vmatpush2.msra.mxu0 0.0
  %1401 = vmatprep.subr.mxu0 0.0
  %1402 = vmatpush2.msra.mxu0 0.0
  %1403 = vmatprep.subr.mxu0 0.0
  %1404 = vmatpush2.msra.mxu0 0.0
  %1405 = vmatprep.subr.mxu0 0.0
  %1406 = vmatpush2.msra.mxu0 0.0
  %1407 = vmatprep.subr.mxu0 0.0
  %1408 = vmatpush2.msra.mxu0 0.0
  %1409 = vmatprep.subr.mxu0 0.0
  %1410 = vmatpush2.msra.mxu0 0.0
  %1411 = vmatprep.mubr.f32.mxu0 0.0
  %1412 = vmatmul.mubr.f32.gmra.mxu0 %v1345
  %v1413 = vpop.f32.mrf.mxu0
  %v1414 = vadd.f32 0.0, %v1413
  %v1415 = vpop.f32.mrf.mxu0
  %1416 = vdwg.mxu0
  %1418 = vrot.lane.b32.xlu0 %v1344, 64
  %v1419 = vpop.permute.xlu0 %1418
  %v1420 = vsel %vm153, %v1419, 0
  %1422 = vmatprep.subr.mxu0 0.0
  %1423 = vmatpush1.msra.mxu0 0.0
  %1424 = vmatprep.subr.mxu0 0.0
  %1425 = vmatpush1.msra.mxu0 0.0
  %1426 = vmatprep.subr.mxu0 0.0
  %1427 = vmatpush1.msra.mxu0 0.0
  %1428 = vmatprep.subr.mxu0 0.0
  %1429 = vmatpush1.msra.mxu0 0.0
  %1430 = vmatprep.subr.mxu0 0.0
  %1431 = vmatpush1.msra.mxu0 0.0
  %1432 = vmatprep.subr.mxu0 0.0
  %1433 = vmatpush1.msra.mxu0 0.0
  %1434 = vmatprep.subr.mxu0 0.0
  %1435 = vmatpush1.msra.mxu0 0.0
  %1436 = vmatprep.subr.mxu0 0.0
  %1437 = vmatpush1.msra.mxu0 0.0
  %1438 = vmatprep.subr.mxu0 0.0
  %1439 = vmatpush1.msra.mxu0 0.0
  %1440 = vmatprep.subr.mxu0 0.0
  %1441 = vmatpush1.msra.mxu0 0.0
  %1442 = vmatprep.subr.mxu0 0.0
  %1443 = vmatpush1.msra.mxu0 0.0
  %1444 = vmatprep.subr.mxu0 0.0
  %1445 = vmatpush1.msra.mxu0 0.0
  %1446 = vmatprep.subr.mxu0 0.0
  %1447 = vmatpush1.msra.mxu0 %v141
  %1448 = vmatprep.subr.mxu0 0.0
  %1449 = vmatpush1.msra.mxu0 %v140
  %1450 = vmatprep.subr.mxu0 0.0
  %1451 = vmatpush1.msra.mxu0 %v139
  %1452 = vmatprep.subr.mxu0 0.0
  %1453 = vmatpush1.msra.mxu0 %v138
  %1454 = vmatprep.subr.mxu0 0.0
  %1455 = vmatpush2.msra.mxu0 0.0
  %1456 = vmatprep.subr.mxu0 0.0
  %1457 = vmatpush2.msra.mxu0 0.0
  %1458 = vmatprep.subr.mxu0 0.0
  %1459 = vmatpush2.msra.mxu0 0.0
  %1460 = vmatprep.subr.mxu0 0.0
  %1461 = vmatpush2.msra.mxu0 0.0
  %1462 = vmatprep.subr.mxu0 0.0
  %1463 = vmatpush2.msra.mxu0 0.0
  %1464 = vmatprep.subr.mxu0 0.0
  %1465 = vmatpush2.msra.mxu0 0.0
  %1466 = vmatprep.subr.mxu0 0.0
  %1467 = vmatpush2.msra.mxu0 0.0
  %1468 = vmatprep.subr.mxu0 0.0
  %1469 = vmatpush2.msra.mxu0 0.0
  %1470 = vmatprep.subr.mxu0 0.0
  %1471 = vmatpush2.msra.mxu0 0.0
  %1472 = vmatprep.subr.mxu0 0.0
  %1473 = vmatpush2.msra.mxu0 0.0
  %1474 = vmatprep.subr.mxu0 0.0
  %1475 = vmatpush2.msra.mxu0 0.0
  %1476 = vmatprep.subr.mxu0 0.0
  %1477 = vmatpush2.msra.mxu0 0.0
  %1478 = vmatprep.subr.mxu0 0.0
  %1479 = vmatpush2.msra.mxu0 0.0
  %1480 = vmatprep.subr.mxu0 0.0
  %1481 = vmatpush2.msra.mxu0 0.0
  %1482 = vmatprep.subr.mxu0 0.0
  %1483 = vmatpush2.msra.mxu0 0.0
  %1484 = vmatprep.subr.mxu0 0.0
  %1485 = vmatpush2.msra.mxu0 0.0
  %1486 = vmatprep.mubr.f32.mxu0 0.0
  %1487 = vmatmul.mubr.f32.gmra.mxu0 %v1420
  %v1488 = vpop.f32.mrf.mxu0
  %v1489 = vadd.f32 %v1414, %v1488
  %v1490 = vpop.f32.mrf.mxu0
  %1491 = vdwg.mxu0
  %v1492 = vadd.f32 %v1489, %v151
  %v1493 = vmul.f32 %v1492, 0.5
  %v1494 = vtanh.pop %v1493
  %v1495 = vadd.f32 %v1494, 1.0
  %v1496 = vmul.f32 %v1495, 0.5
  %v1497 = vtanh.pop %v1492
  %v1498 = vmul.f32 %v1496, %v1237
  %1500 = vrot.lane.b32.xlu0 %v1497, 32
  %v1501 = vpop.permute.xlu0 %1500
  %v1503 = vmul.f32 %v1496, %v1501
  %1505 = vrot.lane.b32.xlu0 %v1503, 32
  %v1506 = vpop.permute.xlu0 %1505
  %v1508 = vadd.f32 %v1498, %v1506
  %v1509 = vtanh.pop %v1508
  %1511 = vrot.lane.b32.xlu0 %v1509, 32
  %v1512 = vpop.permute.xlu0 %1511
  %v1514 = vmul.f32 %v1496, %v1512
  %1516 = vrot.lane.b32.xlu0 %v1514, 64
  %v1517 = vpop.permute.xlu0 %1516
  %1519 = vst.msk [vmem:[#allocation2 + $0x8] sm:$0x3] %vm422, %v1517
  %v1520 = vld [vmem:[#allocation2] sm:$0xff]
  %v1521 = vld [vmem:[#allocation2 + $0x8] sm:$0x3]
  %v1522 = vld [vmem:[%s7] sm:$0xff]
  %v1523 = vld [vmem:[%s7 + $0x8] sm:$0x3]
  %vm1524 = vcmask 80896
  %v1526 = vsel %vm1524, %v1522, 0
  %v1529 = vsel %vm1524, %v1523, 0
  %vm1531 = vcmask 1041408
  %v1533 = vsel %vm1531, %v1521, 0
  %1535 = vmatprep.subr.mxu0 0.0
  %1536 = vmatpush1.msra.mxu0 0.0
  %1537 = vmatprep.subr.mxu0 0.0
  %1538 = vmatpush1.msra.mxu0 0.0
  %1539 = vmatprep.subr.mxu0 0.0
  %1540 = vmatpush1.msra.mxu0 0.0
  %1541 = vmatprep.subr.mxu0 0.0
  %1542 = vmatpush1.msra.mxu0 0.0
  %1543 = vmatprep.subr.mxu0 0.0
  %1544 = vmatpush1.msra.mxu0 0.0
  %1545 = vmatprep.subr.mxu0 0.0
  %1546 = vmatpush1.msra.mxu0 0.0
  %1547 = vmatprep.subr.mxu0 0.0
  %1548 = vmatpush1.msra.mxu0 0.0
  %1549 = vmatprep.subr.mxu0 0.0
  %1550 = vmatpush1.msra.mxu0 0.0
  %1551 = vmatprep.subr.mxu0 0.0
  %1552 = vmatpush1.msra.mxu0 0.0
  %1553 = vmatprep.subr.mxu0 0.0
  %1554 = vmatpush1.msra.mxu0 0.0
  %1555 = vmatprep.subr.mxu0 0.0
  %1556 = vmatpush1.msra.mxu0 0.0
  %1557 = vmatprep.subr.mxu0 0.0
  %1558 = vmatpush1.msra.mxu0 0.0
  %1559 = vmatprep.subr.mxu0 0.0
  %1560 = vmatpush1.msra.mxu0 0.0
  %1561 = vmatprep.subr.mxu0 0.0
  %1562 = vmatpush1.msra.mxu0 0.0
  %1563 = vmatprep.subr.mxu0 0.0
  %1564 = vmatpush1.msra.mxu0 %v1533
  %1565 = vmatprep.subr.mxu0 0.0
  %1566 = vmatpush1.msra.mxu0 %v1520
  %1567 = vmatprep.subr.mxu0 0.0
  %1568 = vmatpush2.msra.mxu0 0.0
  %1569 = vmatprep.subr.mxu0 0.0
  %1570 = vmatpush2.msra.mxu0 0.0
  %1571 = vmatprep.subr.mxu0 0.0
  %1572 = vmatpush2.msra.mxu0 0.0
  %1573 = vmatprep.subr.mxu0 0.0
  %1574 = vmatpush2.msra.mxu0 0.0
  %1575 = vmatprep.subr.mxu0 0.0
  %1576 = vmatpush2.msra.mxu0 0.0
  %1577 = vmatprep.subr.mxu0 0.0
  %1578 = vmatpush2.msra.mxu0 0.0
  %1579 = vmatprep.subr.mxu0 0.0
  %1580 = vmatpush2.msra.mxu0 0.0
  %1581 = vmatprep.subr.mxu0 0.0
  %1582 = vmatpush2.msra.mxu0 0.0
  %1583 = vmatprep.subr.mxu0 0.0
  %1584 = vmatpush2.msra.mxu0 0.0
  %1585 = vmatprep.subr.mxu0 0.0
  %1586 = vmatpush2.msra.mxu0 0.0
  %1587 = vmatprep.subr.mxu0 0.0
  %1588 = vmatpush2.msra.mxu0 0.0
  %1589 = vmatprep.subr.mxu0 0.0
  %1590 = vmatpush2.msra.mxu0 0.0
  %1591 = vmatprep.subr.mxu0 0.0
  %1592 = vmatpush2.msra.mxu0 0.0
  %1593 = vmatprep.subr.mxu0 0.0
  %1594 = vmatpush2.msra.mxu0 0.0
  %1595 = vmatprep.subr.mxu0 0.0
  %1596 = vmatpush2.msra.mxu0 0.0
  %1597 = vmatprep.subr.mxu0 0.0
  %1598 = vmatpush2.msra.mxu0 0.0
  %1599 = vmatprep.mubr.f32.mxu0 0.0
  %1600 = vmatmul.mubr.f32.gmra.mxu0 %v1526
  %v1601 = vpop.f32.mrf.mxu0
  %v1602 = vadd.f32 0.0, %v1601
  %v1603 = vpop.f32.mrf.mxu0
  %1604 = vmatprep.mubr.f32.mxu0 0.0
  %1605 = vmatmul.mubr.f32.gmra.mxu0 %v1529
  %v1606 = vpop.f32.mrf.mxu0
  %v1607 = vadd.f32 0.0, %v1606
  %v1608 = vpop.f32.mrf.mxu0
  %1609 = vdwg.mxu0
  %v1610 = vsel %vm153, %v1602, 0.0
  %1611 = vadd.xlane.f32.xlu0 %v1610
  %v1612 = vpop.xlane.xlu0 %1611
  %v1613 = vsel %vm422, %v1607, 0.0
  %1614 = vadd.xlane.f32.xlu0 %v1613
  %v1615 = vpop.xlane.xlu0 %1614
  %v1616 = vsub.f32 %v1520, %v1612
  %v1617 = vsub.f32 %v1521, %v1615
  %v1618 = vmul.f32 %v1616, %v1616
  %v1619 = vmul.f32 %v1617, %v1617
  %v1621 = vsel %vm1531, %v1619, 0
  %1623 = vmatprep.subr.mxu0 0.0
  %1624 = vmatpush1.msra.mxu0 0.0
  %1625 = vmatprep.subr.mxu0 0.0
  %1626 = vmatpush1.msra.mxu0 0.0
  %1627 = vmatprep.subr.mxu0 0.0
  %1628 = vmatpush1.msra.mxu0 0.0
  %1629 = vmatprep.subr.mxu0 0.0
  %1630 = vmatpush1.msra.mxu0 0.0
  %1631 = vmatprep.subr.mxu0 0.0
  %1632 = vmatpush1.msra.mxu0 0.0
  %1633 = vmatprep.subr.mxu0 0.0
  %1634 = vmatpush1.msra.mxu0 0.0
  %1635 = vmatprep.subr.mxu0 0.0
  %1636 = vmatpush1.msra.mxu0 0.0
  %1637 = vmatprep.subr.mxu0 0.0
  %1638 = vmatpush1.msra.mxu0 0.0
  %1639 = vmatprep.subr.mxu0 0.0
  %1640 = vmatpush1.msra.mxu0 0.0
  %1641 = vmatprep.subr.mxu0 0.0
  %1642 = vmatpush1.msra.mxu0 0.0
  %1643 = vmatprep.subr.mxu0 0.0
  %1644 = vmatpush1.msra.mxu0 0.0
  %1645 = vmatprep.subr.mxu0 0.0
  %1646 = vmatpush1.msra.mxu0 0.0
  %1647 = vmatprep.subr.mxu0 0.0
  %1648 = vmatpush1.msra.mxu0 0.0
  %1649 = vmatprep.subr.mxu0 0.0
  %1650 = vmatpush1.msra.mxu0 0.0
  %1651 = vmatprep.subr.mxu0 0.0
  %1652 = vmatpush1.msra.mxu0 %v1621
  %1653 = vmatprep.subr.mxu0 0.0
  %1654 = vmatpush1.msra.mxu0 %v1618
  %1655 = vmatprep.subr.mxu0 0.0
  %1656 = vmatpush2.msra.mxu0 0.0
  %1657 = vmatprep.subr.mxu0 0.0
  %1658 = vmatpush2.msra.mxu0 0.0
  %1659 = vmatprep.subr.mxu0 0.0
  %1660 = vmatpush2.msra.mxu0 0.0
  %1661 = vmatprep.subr.mxu0 0.0
  %1662 = vmatpush2.msra.mxu0 0.0
  %1663 = vmatprep.subr.mxu0 0.0
  %1664 = vmatpush2.msra.mxu0 0.0
  %1665 = vmatprep.subr.mxu0 0.0
  %1666 = vmatpush2.msra.mxu0 0.0
  %1667 = vmatprep.subr.mxu0 0.0
  %1668 = vmatpush2.msra.mxu0 0.0
  %1669 = vmatprep.subr.mxu0 0.0
  %1670 = vmatpush2.msra.mxu0 0.0
  %1671 = vmatprep.subr.mxu0 0.0
  %1672 = vmatpush2.msra.mxu0 0.0
  %1673 = vmatprep.subr.mxu0 0.0
  %1674 = vmatpush2.msra.mxu0 0.0
  %1675 = vmatprep.subr.mxu0 0.0
  %1676 = vmatpush2.msra.mxu0 0.0
  %1677 = vmatprep.subr.mxu0 0.0
  %1678 = vmatpush2.msra.mxu0 0.0
  %1679 = vmatprep.subr.mxu0 0.0
  %1680 = vmatpush2.msra.mxu0 0.0
  %1681 = vmatprep.subr.mxu0 0.0
  %1682 = vmatpush2.msra.mxu0 0.0
  %1683 = vmatprep.subr.mxu0 0.0
  %1684 = vmatpush2.msra.mxu0 0.0
  %1685 = vmatprep.subr.mxu0 0.0
  %1686 = vmatpush2.msra.mxu0 0.0
  %1687 = vmatprep.mubr.f32.mxu0 0.0
  %1688 = vmatmul.mubr.f32.gmra.mxu0 %v1526
  %v1689 = vpop.f32.mrf.mxu0
  %v1690 = vadd.f32 0.0, %v1689
  %v1691 = vpop.f32.mrf.mxu0
  %1692 = vmatprep.mubr.f32.mxu0 0.0
  %1693 = vmatmul.mubr.f32.gmra.mxu0 %v1529
  %v1694 = vpop.f32.mrf.mxu0
  %v1695 = vadd.f32 0.0, %v1694
  %v1696 = vpop.f32.mrf.mxu0
  %1697 = vdwg.mxu0
  %v1698 = vsel %vm153, %v1690, 0.0
  %1699 = vadd.xlane.f32.xlu0 %v1698
  %v1700 = vpop.xlane.xlu0 %1699
  %v1701 = vsel %vm422, %v1695, 0.0
  %1702 = vadd.xlane.f32.xlu0 %v1701
  %v1703 = vpop.xlane.xlu0 %1702
  %v1704 = vld [vmem:[%s8] sm:$0xff]
  %v1705 = vld [vmem:[%s8 + $0x8] sm:$0x3]
  %v1706 = vadd.f32 %v1700, 1e-05
  %v1707 = vadd.f32 %v1703, 1e-05
  %v1708 = vrsqrt.pop %v1706
  %v1709 = vrsqrt.pop %v1707
  %v1710 = vmul.f32 %v1704, %v1708
  %v1711 = vmul.f32 %v1705, %v1709
  %v1712 = vld [vmem:[%s10] sm:$0xff]
  %v1713 = vld [vmem:[%s10 + $0x8] sm:$0xff]
  %v1714 = vld [vmem:[%s10 + $0x10] sm:$0xff]
  %v1715 = vld [vmem:[%s10 + $0x18] sm:$0xff]
  %v1717 = vsel %vm153, %v1616, 0
  %v1720 = vsel %vm153, %v1617, 0
  %1722 = vmatprep.subr.mxu0 0.0
  %1723 = vmatpush1.msra.mxu0 0.0
  %1724 = vmatprep.subr.mxu0 0.0
  %1725 = vmatpush1.msra.mxu0 0.0
  %1726 = vmatprep.subr.mxu0 0.0
  %1727 = vmatpush1.msra.mxu0 0.0
  %1728 = vmatprep.subr.mxu0 0.0
  %1729 = vmatpush1.msra.mxu0 0.0
  %1730 = vmatprep.subr.mxu0 0.0
  %1731 = vmatpush1.msra.mxu0 0.0
  %1732 = vmatprep.subr.mxu0 0.0
  %1733 = vmatpush1.msra.mxu0 0.0
  %1734 = vmatprep.subr.mxu0 0.0
  %1735 = vmatpush1.msra.mxu0 0.0
  %1736 = vmatprep.subr.mxu0 0.0
  %1737 = vmatpush1.msra.mxu0 0.0
  %1738 = vmatprep.subr.mxu0 0.0
  %1739 = vmatpush1.msra.mxu0 0.0
  %1740 = vmatprep.subr.mxu0 0.0
  %1741 = vmatpush1.msra.mxu0 0.0
  %1742 = vmatprep.subr.mxu0 0.0
  %1743 = vmatpush1.msra.mxu0 0.0
  %1744 = vmatprep.subr.mxu0 0.0
  %1745 = vmatpush1.msra.mxu0 0.0
  %1746 = vmatprep.subr.mxu0 0.0
  %1747 = vmatpush1.msra.mxu0 %v1715
  %1748 = vmatprep.subr.mxu0 0.0
  %1749 = vmatpush1.msra.mxu0 %v1714
  %1750 = vmatprep.subr.mxu0 0.0
  %1751 = vmatpush1.msra.mxu0 %v1713
  %1752 = vmatprep.subr.mxu0 0.0
  %1753 = vmatpush1.msra.mxu0 %v1712
  %1754 = vmatprep.subr.mxu0 0.0
  %1755 = vmatpush2.msra.mxu0 0.0
  %1756 = vmatprep.subr.mxu0 0.0
  %1757 = vmatpush2.msra.mxu0 0.0
  %1758 = vmatprep.subr.mxu0 0.0
  %1759 = vmatpush2.msra.mxu0 0.0
  %1760 = vmatprep.subr.mxu0 0.0
  %1761 = vmatpush2.msra.mxu0 0.0
  %1762 = vmatprep.subr.mxu0 0.0
  %1763 = vmatpush2.msra.mxu0 0.0
  %1764 = vmatprep.subr.mxu0 0.0
  %1765 = vmatpush2.msra.mxu0 0.0
  %1766 = vmatprep.subr.mxu0 0.0
  %1767 = vmatpush2.msra.mxu0 0.0
  %1768 = vmatprep.subr.mxu0 0.0
  %1769 = vmatpush2.msra.mxu0 0.0
  %1770 = vmatprep.subr.mxu0 0.0
  %1771 = vmatpush2.msra.mxu0 0.0
  %1772 = vmatprep.subr.mxu0 0.0
  %1773 = vmatpush2.msra.mxu0 0.0
  %1774 = vmatprep.subr.mxu0 0.0
  %1775 = vmatpush2.msra.mxu0 0.0
  %1776 = vmatprep.subr.mxu0 0.0
  %1777 = vmatpush2.msra.mxu0 0.0
  %1778 = vmatprep.subr.mxu0 0.0
  %1779 = vmatpush2.msra.mxu0 0.0
  %1780 = vmatprep.subr.mxu0 0.0
  %1781 = vmatpush2.msra.mxu0 0.0
  %1782 = vmatprep.subr.mxu0 0.0
  %1783 = vmatpush2.msra.mxu0 0.0
  %1784 = vmatprep.subr.mxu0 0.0
  %1785 = vmatpush2.msra.mxu0 0.0
  %1786 = vmatprep.mubr.f32.mxu0 0.0
  %1787 = vmatmul.mubr.f32.gmra.mxu0 %v1717
  %v1788 = vpop.f32.mrf.mxu0
  %v1789 = vadd.f32 0.0, %v1788
  %v1790 = vpop.f32.mrf.mxu0
  %1791 = vmatprep.mubr.f32.mxu0 0.0
  %1792 = vmatmul.mubr.f32.gmra.mxu0 %v1720
  %v1793 = vpop.f32.mrf.mxu0
  %v1794 = vadd.f32 0.0, %v1793
  %v1795 = vpop.f32.mrf.mxu0
  %1796 = vdwg.mxu0
  %1798 = vset.pattern.permute.xlu0 0
  %1799 = vperm.xlu0 %1798, %v1710
  %v1800 = vpop.permute.xlu0 %1799
  %1803 = vset.pattern.permute.xlu0 0
  %1804 = vperm.xlu0 %1803, %v1711
  %v1805 = vpop.permute.xlu0 %1804
  %v1807 = vmul.f32 %v1789, %v1800
  %v1808 = vmul.f32 %v1794, %v1805
  %v1809 = vld [vmem:[%s9] sm:$0xff]
  %v1810 = vld [vmem:[%s9 + $0x8] sm:$0x3]
  %v1811 = vadd.f32 %v1807, %v1809
  %v1812 = vadd.f32 %v1808, %v1810
  %1813 = vst.msk [vmem:[%s11] sm:$0xff] %vm48, %v1811
  %vm1814 = vcmask 25600
  %1815 = vst.msk [vmem:[%s11 + $0x8] sm:$0x3] %vm1814, %v1812
  // Predicated region
  $region46: #{lstm_forward.1} parent=0 // pred_check
    _
  $region47: #{lstm_forward.1} parent=0 // pred_check_branch
    %1817 = sbr.rel (0) target = $region49
  $region48: #{lstm_forward.1} parent=0 // pred_region
    _
  $region49: #{lstm_forward.1} parent=0 // pred_fallthru
    _
  // Predicated region
  $region50: #{lstm_forward.1} parent=0 // pred_check
    _
  $region51: #{lstm_forward.1} parent=0 // pred_check_branch
    %1819 = sbr.rel (0) target = $region53
  $region52: #{lstm_forward.1} parent=0 // pred_region
    _
  $region53: #{lstm_forward.1} parent=0 // pred_fallthru
    _

</llo_original>
